<compile_context>
chip_gen: v7x
topology: tpu7x:2x2x1
jax: 0.10.0
libtpu: 0.0.40
codegen_flags: <defaults>
</compile_context>

<pallas_src>
import numpy as np
import jax
import jax.numpy as jnp
from jax.experimental import pallas as pl
from jax.experimental.pallas import tpu as pltpu

# ---- small, module-consistent configuration (992 -> 32, [200,200] -> [16,16]) ----
B = 2                    # batch
CH = 3                   # image channels
IMG = 32                 # stands in for the hard-coded 992 of the PyTorch module
OUT_H, OUT_W = 16, 16    # estimateTransformation output_size (stands in for [200, 200])
PT = 8                   # pt_num = [8, 8]
F_PTS = PT * PT          # 64 fiducial points
F_TOT = F_PTS + 3        # 67
PN = IMG * IMG           # 1024 output pixels (lane-dense last dim)
K_PAD = 72               # contraction dim padded 67(+1 offset row) -> 72 (next multiple of 8)
EPS = 1e-6


# ============================ parameter / buffer setup (numpy, init-time) ============================
def _build_C(Fnum):
    im_x, im_y = np.mgrid[-1:1:complex(np.sqrt(Fnum)), -1:1:complex(np.sqrt(Fnum))]
    return np.stack((im_y, im_x), axis=2).reshape(-1, 2)


def _build_inv_delta_C(Fnum, C):
    hat_C = np.zeros((Fnum, Fnum), dtype=float)
    for i in range(Fnum):
        for j in range(i, Fnum):
            r = np.linalg.norm(C[i] - C[j])
            hat_C[i, j] = r
            hat_C[j, i] = r
    np.fill_diagonal(hat_C, 1)
    hat_C = hat_C ** 2 * np.log(hat_C ** 2)
    delta_C = np.concatenate(
        [np.concatenate([np.ones((Fnum, 1)), C, hat_C], axis=1),
         np.concatenate([np.zeros((1, 3)), np.ones((1, Fnum))], axis=1),
         np.concatenate([np.zeros((2, 3)), np.transpose(C)], axis=1)], axis=0)
    # TODO(synk): np.linalg.inv has no Pallas equivalent; this is an __init__-time buffer.
    return np.linalg.inv(delta_C)


def _build_P(I_r_width, I_r_height):
    I_r_x = np.linspace(-1, 1, I_r_width)
    I_r_y = np.linspace(-1, 1, I_r_height)
    gx, gy = np.meshgrid(I_r_x, I_r_y)
    return np.stack((gx, gy), axis=2).reshape(-1, 2)


def _build_P_hat(Fnum, C, P):
    n = P.shape[0]
    P_tile = np.tile(np.expand_dims(P, axis=1), (1, Fnum, 1))
    C_tile = np.expand_dims(C, axis=0)
    P_diff = P_tile - C_tile
    rbf_norm = np.linalg.norm(P_diff, ord=2, axis=2)
    rbf = 2 * np.square(rbf_norm) * np.log(rbf_norm + EPS)
    return np.concatenate([np.ones((n, 1)), P, rbf], axis=1)


def _bilinear_resize_matrix(s_out, s_in):
    # F.interpolate(mode='bilinear', align_corners=True) as a dense (s_out, s_in) matrix.
    W = np.zeros((s_out, s_in), np.float32)
    scale = 0.0 if s_out == 1 else (s_in - 1) / (s_out - 1)
    for i in range(s_out):
        src = i * scale
        i0 = min(int(np.floor(src)), s_in - 1)
        i1 = min(i0 + 1, s_in - 1)
        w1 = src - i0
        W[i, i0] += 1.0 - w1
        W[i, i1] += w1
    return W


# Precomposed map matrix (pixel coordinates, align_corners affine folded in):
#   pixel[b, d, q] = a_pts[b, d, :] @ K_T[:, q]
#   K_T[:67]  = (kron(W_y, W_x) @ P_hat @ inv_delta_C).T * 0.5*(IMG-1)
#   K_T[67]   = 0.5*(IMG-1)        (constant offset row, paired with a_pts[..., 67] = 1)
# NOTE: the scale fold is valid because the grid_sample target is square (IMG x IMG),
#       matching the PyTorch module's hard-coded 992x992.
_C_pts = _build_C(F_PTS)
_P_pts = _build_P(OUT_W, OUT_H)
_inv_delta_C = _build_inv_delta_C(F_PTS, _C_pts).astype(np.float32)         # (67, 67)
_P_hat = _build_P_hat(F_PTS, _C_pts, _P_pts).astype(np.float32)             # (256, 67)
_W_y = _bilinear_resize_matrix(IMG, OUT_H)                                  # (32, 16)
_W_x = _bilinear_resize_matrix(IMG, OUT_W)                                  # (32, 16)
_K = np.kron(_W_y, _W_x).astype(np.float32) @ (_P_hat @ _inv_delta_C)       # (1024, 67)
_S_PIX = np.float32(0.5 * (IMG - 1))
_K_T_pad = np.zeros((K_PAD, PN), np.float32)
_K_T_pad[:F_TOT, :] = _K.T * _S_PIX
_K_T_pad[F_TOT, :] = _S_PIX
K_T_PAD = jnp.asarray(_K_T_pad)                                             # (72, 1024)


# ==================================== Pallas warp kernel ====================================
def warp_kernel(a_ref, k_ref, img_ref, out_ref):
    # Fused TPS + bilinear upsample + grid_sample for one batch element.
    #   a_ref:   (2, K_PAD)   control points (row 0 = x, row 1 = y) + offset column, zero pad
    #   k_ref:   (K_PAD, PN)  precomposed map matrix in pixel coordinates (constant, resident)
    #   img_ref: (C*H, W)     FFT high-pass-filtered image, channels stacked on the sublane axis
    #   out_ref: (C, PN)      sampled image, lane-dense (PN = H*W of the output)
    c, pn = out_ref.shape
    ch_h, w = img_ref.shape
    h = ch_h // c

    # Entire TPS + F.interpolate + align_corners un-normalization: ONE small MXU matmul.
    m = jnp.dot(a_ref[...], k_ref[...], preferred_element_type=jnp.float32)   # (2, PN) pixel coords

    # ---- x (column) interpolation: separable one-hot weights consumed by the MXU ----
    x = jnp.clip(m[0:1, :], 0.0, float(w - 1))          # padding_mode='border'
    x0 = jnp.floor(x)
    wx = x - x0                                          # (1, PN)
    x0i = x0.astype(jnp.int32)
    x1i = jnp.minimum(x0i + 1, w - 1)
    wi = jax.lax.broadcasted_iota(jnp.int32, (w, pn), 0)
    # coincident corners (x0 == x1) merge correctly: contributions sum to 1
    ax = jnp.where(wi == x0i, 1.0 - wx, 0.0) + jnp.where(wi == x1i, wx, 0.0)   # (W, PN)

    # Stacked-channel column interpolation: one (C*H, W) @ (W, PN) matmul for all channels.
    g = jnp.dot(img_ref[...], ax, preferred_element_type=jnp.float32)          # (C*H, PN)

    # ---- y (row) interpolation: VPU multiply + sublane reduction (ay built after ax is consumed) ----
    y = jnp.clip(m[1:2, :], 0.0, float(h - 1))
    y0 = jnp.floor(y)
    wy = y - y0
    y0i = y0.astype(jnp.int32)
    y1i = jnp.minimum(y0i + 1, h - 1)
    hi = jax.lax.broadcasted_iota(jnp.int32, (h, pn), 0)
    ay = jnp.where(hi == y0i, 1.0 - wy, 0.0) + jnp.where(hi == y1i, wy, 0.0)    # (H, PN)

    # (C*H, PN) -> (C, H, PN) is a leading-dim regroup (sublane-aligned, no tile crossing),
    # then one blend + one reduction + ONE full-lane store of the whole (C, PN) slab.
    out_ref[...] = jnp.sum(g.reshape(c, h, pn) * ay[None, :, :], axis=1)        # (C, PN)


def warp_pallas(a_pts, k_mat, img_flat, channels):
    # a_pts: (B, 2, K_PAD), k_mat: (K_PAD, PN), img_flat: (B, C*H, W)  ->  (B, C, PN)
    b, chh, w = img_flat.shape
    kp, pn = k_mat.shape
    # TODO(synk): at production size (IMG=992 -> PN~984K) add a PN grid axis and tile
    # k_mat / ax / ay / out over PN (tile sized to the per-generation VMEM limit).
    return pl.pallas_call(
        warp_kernel,
        out_shape=jax.ShapeDtypeStruct((b, channels, pn), jnp.float32),
        grid=(b,),
        in_specs=[
            pl.BlockSpec((None, 2, kp), lambda i: (i, 0, 0)),       # squeezed -> (2, K_PAD)
            pl.BlockSpec((kp, pn), lambda i: (0, 0)),               # constant block, stays resident
            pl.BlockSpec((None, chh, w), lambda i: (i, 0, 0)),      # squeezed -> (C*H, W)
        ],
        out_specs=pl.BlockSpec((None, channels, pn), lambda i: (i, 0, 0)),  # squeezed -> (C, PN)
        compiler_params=pltpu.CompilerParams(
            dimension_semantics=("parallel",)),                     # 2 batch elems -> 2 TCs on v7x
    )(a_pts, k_mat, img_flat)


# ==================================== forward (wrapper) ====================================
def _fdr():
    # blank 255 image frequency split (FFT / ifftshift done in plain JAX glue).
    # TODO(synk): fft2/ifftshift have no Pallas equivalent; kept as jnp ops.
    blank = 255.0 * jnp.ones((1, CH, IMG, IMG), jnp.float32)
    bfreq = jnp.fft.ifftshift(jnp.fft.fft2(blank))     # shifts ALL axes, exactly like torch
    ys = jnp.arange(IMG, dtype=jnp.float32).reshape(IMG, 1)
    xs = jnp.arange(IMG, dtype=jnp.float32).reshape(1, IMG)
    sh = IMG * 0.06
    sw = IMG * 0.06
    inside = ((xs < IMG / 2 + sw) & (xs > IMG / 2 - sw)
              & (ys < IMG / 2 + sh) & (ys > IMG / 2 - sh))
    lpf = jnp.broadcast_to(inside.astype(jnp.float32)[None, None], (1, CH, IMG, IMG))
    hpf = 1.0 - lpf
    return lpf * bfreq, hpf


def _fourier_transform(im, lowpart, hpf):
    # Plain jnp (no Pallas): the elementwise filter math is tiny and fuses with the FFT
    # pre/post ops under jit; lowpart/hpf broadcast lazily (no materialized (N*C, H*W) slabs).
    # TODO(synk): fft2/ifft2 themselves have no Pallas equivalent.
    # Per-sample ifftshift over (channel, H, W): the torch reference calls ifftshift with no
    # dim on a (1, C, H, W) tensor, so the CHANNEL axis is shifted too — replicated here.
    freq = jnp.fft.ifftshift(jnp.fft.fft2(im), axes=(1, 2, 3))
    rhpf = lowpart + hpf * freq
    spatial = jnp.fft.ifft2(rhpf)
    # |complex| >= 0, so clip(0, 255) reduces to an upper clamp.
    return jnp.minimum(jnp.abs(spatial), 255.0).astype(jnp.float32)


@jax.jit
def forward(batch_I, batch_ref, batch_src_pt):
    b = batch_src_pt.shape[0]
    lowpart, hpf = _fdr()

    # src fiducial-point normalization (exactly as in the PyTorch forward, 992 -> IMG)
    src = batch_src_pt / float(IMG)
    src = jnp.transpose(src, (0, 3, 2, 1)).reshape(b, -1, 2)
    src = (src - 0.5) * 2.0
    c_prime = jnp.concatenate([src, jnp.zeros((b, 3, 2), jnp.float32)], axis=1)   # (B, 67, 2)
    # lane-dense control-point slab: (B, 2, 72) = [67 control coords | 1 (affine offset) | zeros]
    a_pts = jnp.transpose(c_prime, (0, 2, 1))                                     # (B, 2, 67)
    a_pts = jnp.concatenate(
        [a_pts,
         jnp.ones((b, 2, 1), jnp.float32),
         jnp.zeros((b, 2, K_PAD - F_TOT - 1), jnp.float32)], axis=2)              # (B, 2, 72)

    # FDR high-pass-filtered images: one FFT / combine / iFFT / clip pass for both inputs.
    both = jnp.concatenate([batch_I, batch_ref], axis=0)                          # (2B, C, H, W)
    both_ffted = _fourier_transform(both, lowpart, hpf)
    batch_I_ffted = both_ffted[:b]
    batch_ref_ffted = both_ffted[b:]

    # TPS + bilinear upsample + grid_sample(border, align_corners=True) in one Pallas kernel.
    img_flat = batch_I_ffted.reshape(b, CH * IMG, IMG)                            # (B, C*H, W)
    out = warp_pallas(a_pts, K_T_PAD, img_flat, CH)                               # (B, C, PN)
    batch_I_r = out.reshape(b, CH, IMG, IMG)
    return batch_I_r, batch_ref_ffted


# ======================================== main ========================================
if __name__ == "__main__":
    key = jax.random.PRNGKey(0)
    k1, k2, k3 = jax.random.split(key, 3)

    batch_I = jax.random.uniform(k1, (B, CH, IMG, IMG), jnp.float32, 0.0, 255.0)
    batch_ref = jax.random.uniform(k2, (B, CH, IMG, IMG), jnp.float32, 0.0, 255.0)

    # predicted warped-image control points in pixel coords (regular 8x8 grid + small jitter)
    lin = jnp.linspace(0.0, float(IMG), PT)
    gx, gy = jnp.meshgrid(lin, lin, indexing="xy")
    base = jnp.stack([gx, gy], axis=0)                            # (2, 8, 8)
    jitter = jax.random.uniform(k3, (B, 2, PT, PT), jnp.float32, -1.0, 1.0)
    batch_src_pt = base[None] + jitter                            # (B, 2, 8, 8)

    out_I_r, out_ref_ffted = forward(batch_I, batch_ref, batch_src_pt)
    jax.block_until_ready((out_I_r, out_ref_ffted))

    assert out_I_r.shape == (B, CH, IMG, IMG)
    assert out_ref_ffted.shape == (B, CH, IMG, IMG)
    assert bool(jnp.all(jnp.isfinite(out_I_r)))
    assert bool(jnp.all(jnp.isfinite(out_ref_ffted)))
    # bilinear sampling of a [0, 255]-clipped image is a convex combination -> stays in range
    assert float(jnp.min(out_I_r)) >= -1e-2 and float(jnp.max(out_I_r)) <= 255.0 + 1e-2
    print("KERNEL_OK")
</pallas_src>

<mosaic_0001>
module attributes {stable_mosaic.version = 11 : i64} {
  func.func @warp_kernel(%arg0: i32, %arg1: memref<1x2x72xf32, #tpu.memory_space<vmem>>, %arg2: memref<72x1024xf32, #tpu.memory_space<vmem>>, %arg3: memref<1x96x32xf32, #tpu.memory_space<vmem>>, %arg4: memref<1x3x1024xf32, #tpu.memory_space<vmem>>) attributes {dimension_semantics = [#tpu.dimension_semantics<parallel>], iteration_bounds = array<i64: 2>, scalar_prefetch = 0 : i64, scratch_operands = 0 : i64, tpu.core_type = #tpu.core_type<tc>, window_params = [{transform_indices = @transform_0, window_bounds = array<i64: 1, 2, 72>}, {pipeline_mode = #tpu.pipeline_mode<synchronous>, transform_indices = @transform_1, window_bounds = array<i64: 72, 1024>}, {transform_indices = @transform_2, window_bounds = array<i64: 1, 96, 32>}, {transform_indices = @transform_3, window_bounds = array<i64: 1, 3, 1024>}]} {
    %c0 = arith.constant 0 : index
    %c0_0 = arith.constant 0 : index
    %c0_1 = arith.constant 0 : index
    %0 = vector.load %arg1[%c0, %c0_0, %c0_1] : memref<1x2x72xf32, #tpu.memory_space<vmem>>, vector<1x2x72xf32>
    %1 = vector.shape_cast %0 : vector<1x2x72xf32> to vector<2x72xf32>
    %c0_2 = arith.constant 0 : index
    %c0_3 = arith.constant 0 : index
    %2 = vector.load %arg2[%c0_2, %c0_3] : memref<72x1024xf32, #tpu.memory_space<vmem>>, vector<72x1024xf32>
    %cst = arith.constant dense<0.000000e+00> : vector<2x1024xf32>
    %3 = tpu.matmul %1, %2, %cst {dimension_numbers = #tpu.dot_dimension_numbers<[1], [0], [0], [1], [0, 0, 1, 1], [], []>} : vector<2x72xf32>, vector<72x1024xf32>, vector<2x1024xf32> -> vector<2x1024xf32>
    %4 = vector.extract_strided_slice %3 {offsets = [0, 0], sizes = [1, 1024], strides = [1, 1]} : vector<2x1024xf32> to vector<1x1024xf32>
    %cst_4 = arith.constant 0.000000e+00 : f32
    %cst_5 = arith.constant 3.100000e+01 : f32
    %5 = vector.broadcast %cst_4 : f32 to vector<1x1024xf32>
    %6 = arith.maximumf %5, %4 : vector<1x1024xf32>
    %7 = vector.broadcast %cst_5 : f32 to vector<1x1024xf32>
    %8 = arith.minimumf %7, %6 : vector<1x1024xf32>
    %9 = math.floor %8 : vector<1x1024xf32>
    %10 = arith.subf %8, %9 : vector<1x1024xf32>
    %11 = arith.fptosi %9 : vector<1x1024xf32> to vector<1x1024xi32>
    %c1_i32 = arith.constant 1 : i32
    %12 = vector.broadcast %c1_i32 : i32 to vector<1x1024xi32>
    %13 = arith.addi %11, %12 : vector<1x1024xi32>
    %c31_i32 = arith.constant 31 : i32
    %14 = vector.broadcast %c31_i32 : i32 to vector<1x1024xi32>
    %15 = arith.minsi %13, %14 : vector<1x1024xi32>
    %16 = tpu.iota {dimensions = array<i32: 0>} : vector<32x1024xi32>
    %17 = vector.broadcast %11 : vector<1x1024xi32> to vector<32x1024xi32>
    %18 = arith.cmpi eq, %16, %17 : vector<32x1024xi32>
    %cst_6 = arith.constant 1.000000e+00 : f32
    %19 = vector.broadcast %cst_6 : f32 to vector<1x1024xf32>
    %20 = arith.subf %19, %10 : vector<1x1024xf32>
    %cst_7 = arith.constant 0.000000e+00 : f32
    %21 = vector.shape_cast %20 : vector<1x1024xf32> to vector<1x1024xf32>
    %22 = vector.broadcast %21 : vector<1x1024xf32> to vector<32x1024xf32>
    %23 = vector.broadcast %cst_7 : f32 to vector<32x1024xf32>
    %24 = arith.select %18, %22, %23 : vector<32x1024xi1>, vector<32x1024xf32>
    %25 = vector.broadcast %15 : vector<1x1024xi32> to vector<32x1024xi32>
    %26 = arith.cmpi eq, %16, %25 : vector<32x1024xi32>
    %cst_8 = arith.constant 0.000000e+00 : f32
    %27 = vector.shape_cast %10 : vector<1x1024xf32> to vector<1x1024xf32>
    %28 = vector.broadcast %27 : vector<1x1024xf32> to vector<32x1024xf32>
    %29 = vector.broadcast %cst_8 : f32 to vector<32x1024xf32>
    %30 = arith.select %26, %28, %29 : vector<32x1024xi1>, vector<32x1024xf32>
    %31 = arith.addf %24, %30 : vector<32x1024xf32>
    %c0_9 = arith.constant 0 : index
    %c0_10 = arith.constant 0 : index
    %c0_11 = arith.constant 0 : index
    %32 = vector.load %arg3[%c0_9, %c0_10, %c0_11] : memref<1x96x32xf32, #tpu.memory_space<vmem>>, vector<1x96x32xf32>
    %33 = vector.shape_cast %32 : vector<1x96x32xf32> to vector<96x32xf32>
    %cst_12 = arith.constant dense<0.000000e+00> : vector<96x1024xf32>
    %34 = tpu.matmul %33, %31, %cst_12 {dimension_numbers = #tpu.dot_dimension_numbers<[1], [0], [0], [1], [0, 0, 1, 1], [], []>} : vector<96x32xf32>, vector<32x1024xf32>, vector<96x1024xf32> -> vector<96x1024xf32>
    %35 = vector.extract_strided_slice %3 {offsets = [1, 0], sizes = [1, 1024], strides = [1, 1]} : vector<2x1024xf32> to vector<1x1024xf32>
    %cst_13 = arith.constant 0.000000e+00 : f32
    %cst_14 = arith.constant 3.100000e+01 : f32
    %36 = vector.broadcast %cst_13 : f32 to vector<1x1024xf32>
    %37 = arith.maximumf %36, %35 : vector<1x1024xf32>
    %38 = vector.broadcast %cst_14 : f32 to vector<1x1024xf32>
    %39 = arith.minimumf %38, %37 : vector<1x1024xf32>
    %40 = math.floor %39 : vector<1x1024xf32>
    %41 = arith.subf %39, %40 : vector<1x1024xf32>
    %42 = arith.fptosi %40 : vector<1x1024xf32> to vector<1x1024xi32>
    %c1_i32_15 = arith.constant 1 : i32
    %43 = vector.broadcast %c1_i32_15 : i32 to vector<1x1024xi32>
    %44 = arith.addi %42, %43 : vector<1x1024xi32>
    %c31_i32_16 = arith.constant 31 : i32
    %45 = vector.broadcast %c31_i32_16 : i32 to vector<1x1024xi32>
    %46 = arith.minsi %44, %45 : vector<1x1024xi32>
    %47 = tpu.iota {dimensions = array<i32: 0>} : vector<32x1024xi32>
    %48 = vector.broadcast %42 : vector<1x1024xi32> to vector<32x1024xi32>
    %49 = arith.cmpi eq, %47, %48 : vector<32x1024xi32>
    %cst_17 = arith.constant 1.000000e+00 : f32
    %50 = vector.broadcast %cst_17 : f32 to vector<1x1024xf32>
    %51 = arith.subf %50, %41 : vector<1x1024xf32>
    %cst_18 = arith.constant 0.000000e+00 : f32
    %52 = vector.shape_cast %51 : vector<1x1024xf32> to vector<1x1024xf32>
    %53 = vector.broadcast %52 : vector<1x1024xf32> to vector<32x1024xf32>
    %54 = vector.broadcast %cst_18 : f32 to vector<32x1024xf32>
    %55 = arith.select %49, %53, %54 : vector<32x1024xi1>, vector<32x1024xf32>
    %56 = vector.broadcast %46 : vector<1x1024xi32> to vector<32x1024xi32>
    %57 = arith.cmpi eq, %47, %56 : vector<32x1024xi32>
    %cst_19 = arith.constant 0.000000e+00 : f32
    %58 = vector.shape_cast %41 : vector<1x1024xf32> to vector<1x1024xf32>
    %59 = vector.broadcast %58 : vector<1x1024xf32> to vector<32x1024xf32>
    %60 = vector.broadcast %cst_19 : f32 to vector<32x1024xf32>
    %61 = arith.select %57, %59, %60 : vector<32x1024xi1>, vector<32x1024xf32>
    %62 = arith.addf %55, %61 : vector<32x1024xf32>
    %63 = vector.shape_cast %34 : vector<96x1024xf32> to vector<3x32x1024xf32>
    %64 = vector.shape_cast %62 : vector<32x1024xf32> to vector<1x32x1024xf32>
    %65 = vector.broadcast %64 : vector<1x32x1024xf32> to vector<3x32x1024xf32>
    %66 = arith.mulf %63, %65 : vector<3x32x1024xf32>
    %cst_20 = arith.constant dense<0.000000e+00> : vector<3x1024xf32>
    %67 = vector.multi_reduction <add>, %66, %cst_20 [1] : vector<3x32x1024xf32> to vector<3x1024xf32>
    %c0_21 = arith.constant 0 : index
    %c0_22 = arith.constant 0 : index
    %c0_23 = arith.constant 0 : index
    %68 = vector.load %arg4[%c0_21, %c0_22, %c0_23] : memref<1x3x1024xf32, #tpu.memory_space<vmem>>, vector<1x3x1024xf32>
    %69 = vector.shape_cast %68 : vector<1x3x1024xf32> to vector<3x1024xf32>
    %70 = vector.shape_cast %67 : vector<3x1024xf32> to vector<1x3x1024xf32>
    tpu.vector_store %arg4[%c0_21, %c0_22, %c0_23], %70 {strides = array<i32>} : memref<1x3x1024xf32, #tpu.memory_space<vmem>>, vector<1x3x1024xf32>,
    return
  }
  func.func @transform_0(%arg0: i32) -> (i32, i32, i32) {
    %c0_i32 = arith.constant 0 : i32
    %c0_i32_0 = arith.constant 0 : i32
    %c0_i32_1 = arith.constant 0 : i32
    return %arg0, %c0_i32, %c0_i32_0 : i32, i32, i32
  }
  func.func @transform_1(%arg0: i32) -> (i32, i32) {
    %c0_i32 = arith.constant 0 : i32
    %c0_i32_0 = arith.constant 0 : i32
    %c0_i32_1 = arith.constant 0 : i32
    return %c0_i32, %c0_i32_0 : i32, i32
  }
  func.func @transform_2(%arg0: i32) -> (i32, i32, i32) {
    %c0_i32 = arith.constant 0 : i32
    %c0_i32_0 = arith.constant 0 : i32
    %c0_i32_1 = arith.constant 0 : i32
    return %arg0, %c0_i32, %c0_i32_0 : i32, i32, i32
  }
  func.func @transform_3(%arg0: i32) -> (i32, i32, i32) {
    %c0_i32 = arith.constant 0 : i32
    %c0_i32_0 = arith.constant 0 : i32
    %c0_i32_1 = arith.constant 0 : i32
    return %arg0, %c0_i32, %c0_i32_0 : i32, i32, i32
  }
}

</mosaic_0001>

<llo_original>
// kernel: forward.1
$region0: #{forward.1}
  #allocation0 [shape = 'u32[]', space=smem, size = 0x4, offset = 0x4, fixed_abs, tag = 'smem constant byte address 0x4 - core index']
  #allocation1 [shape = 'u32[144,128]{1,0:T(1,128)}', space=vmem, size = 0x12000, scoped, tag = 'internal scratch']
  %s0 = inlined_call_operand.vmem [shape: f32[2,2,72], index: 0, kind: input, shape index: {}]
  %s1 = inlined_call_operand.vmem [shape: f32[72,1024], index: 1, kind: input, shape index: {}]
  %s2 = inlined_call_operand.vmem [shape: f32[2,96,32], index: 2, kind: input, shape index: {}]
  %s3 = inlined_call_operand.vmem [shape: f32[2,3,1024], index: 3, kind: output, shape index: {}]
  %s4 = sld [smem:[#allocation0]]
  $region45: #{forward.1} parent=0
    _
  %s6 = ssub.s32 1, %s4
  %s7 = scalar_select 0, %s6, %s4
  loop: start=0, step=1, limit=4
  $region2: #{forward.1} parent=0 // loop_pre_header
    _
  $region3: #{forward.1} parent=0 // loop_header
    %s9 = sphi 0, %s13
    %p10 = scmp.ge.s32.totalorder %s9, 4
    %s19 = sphi 0, %s21
    %s22 = sphi 0, %s19
    %s23 = sphi 0, %s22
    %s39 = sphi 0, %s23
    %s43 = sphi 0, %s43
    %s45 = sphi 0, %s43
    %s46 = sphi 0, %s45
    %s60 = sphi 0, %s46
    %s66 = sphi 0, %s68
    %s69 = sphi 0, %s66
    %s70 = sphi 0, %s69
    %s86 = sphi 0, %s70
    %s92 = sphi 0, %s94
    %s95 = sphi 0, %s92
    %s96 = sphi 0, %s95
    %s112 = sphi 0, %s96
  $region4: #{forward.1} parent=0 // loop_header_branch
    %12 = sbr.rel (%p10) target = $region8
  $region5: #{forward.1} parent=0 // loop_body
    %s14 = ssub.s32 %s9, 1
    %s15 = ssub.s32 %s9, 2
    %s16 = sadd.s32 %s9, 1
    %s17 = ssub.s32 %s9, %s16
    %p18 = scmp.eq.s32.totalorder %s17, 0
    %s20 = sadd.s32 %s19, 1
    %s21 = scalar_select %p18, %s19, %s20
    %p24 = pneg %p18
    %p25 = scmp.eq.s32.totalorder %s9, 1
    %p26 = por %p24, %p25
    %p27 = scmp.ne.s32.totalorder %s19, %s22
    %p28 = scmp.eq.s32.totalorder %s9, 0
    %p29 = por %p27, %p28
    %p30 = scmp.ne.s32.totalorder %s19, %s22
    %p31 = scmp.eq.s32.totalorder %s14, 1
    %p32 = por %p30, %p31
    %p33 = scmp.ne.s32.totalorder %s22, %s23
    %p34 = scmp.eq.s32.totalorder %s14, 0
    %p35 = por %p33, %p34
    %p36 = scmp.ne.s32.totalorder %s22, %s23
    %p37 = scmp.eq.s32.totalorder %s15, 1
    %p38 = por %p36, %p37
    %p40 = scmp.ne.s32.totalorder %s23, %s39
    %p41 = scmp.eq.s32.totalorder %s15, 0
    %p42 = por %p40, %p41
    %s44 = sadd.s32 %s43, 1
    %p47 = scmp.eq.s32.totalorder %s9, 1
    %p48 = scmp.ne.s32.totalorder %s43, %s45
    %p49 = scmp.eq.s32.totalorder %s9, 0
    %p50 = por %p48, %p49
    %p51 = scmp.ne.s32.totalorder %s43, %s45
    %p52 = scmp.eq.s32.totalorder %s14, 1
    %p53 = por %p51, %p52
    %p54 = scmp.ne.s32.totalorder %s45, %s46
    %p55 = scmp.eq.s32.totalorder %s14, 0
    %p56 = por %p54, %p55
    %p57 = scmp.ne.s32.totalorder %s45, %s46
    %p58 = scmp.eq.s32.totalorder %s15, 1
    %p59 = por %p57, %p58
    %p61 = scmp.ne.s32.totalorder %s46, %s60
    %p62 = scmp.eq.s32.totalorder %s15, 0
    %p63 = por %p61, %p62
    %s64 = ssub.s32 %s9, %s16
    %p65 = scmp.eq.s32.totalorder %s64, 0
    %s67 = sadd.s32 %s66, 1
    %s68 = scalar_select %p65, %s66, %s67
    %p71 = pneg %p65
    %p72 = scmp.eq.s32.totalorder %s9, 1
    %p73 = por %p71, %p72
    %p74 = scmp.ne.s32.totalorder %s66, %s69
    %p75 = scmp.eq.s32.totalorder %s9, 0
    %p76 = por %p74, %p75
    %p77 = scmp.ne.s32.totalorder %s66, %s69
    %p78 = scmp.eq.s32.totalorder %s14, 1
    %p79 = por %p77, %p78
    %p80 = scmp.ne.s32.totalorder %s69, %s70
    %p81 = scmp.eq.s32.totalorder %s14, 0
    %p82 = por %p80, %p81
    %p83 = scmp.ne.s32.totalorder %s69, %s70
    %p84 = scmp.eq.s32.totalorder %s15, 1
    %p85 = por %p83, %p84
    %p87 = scmp.ne.s32.totalorder %s70, %s86
    %p88 = scmp.eq.s32.totalorder %s15, 0
    %p89 = por %p87, %p88
    %s90 = ssub.s32 %s9, %s16
    %p91 = scmp.eq.s32.totalorder %s90, 0
    %s93 = sadd.s32 %s92, 1
    %s94 = scalar_select %p91, %s92, %s93
    %p97 = pneg %p91
    %p98 = scmp.eq.s32.totalorder %s9, 1
    %p99 = por %p97, %p98
    %p100 = scmp.ne.s32.totalorder %s92, %s95
    %p101 = scmp.eq.s32.totalorder %s9, 0
    %p102 = por %p100, %p101
    %p103 = scmp.ne.s32.totalorder %s92, %s95
    %p104 = scmp.eq.s32.totalorder %s14, 1
    %p105 = por %p103, %p104
    %p106 = scmp.ne.s32.totalorder %s95, %s96
    %p107 = scmp.eq.s32.totalorder %s14, 0
    %p108 = por %p106, %p107
    %p109 = scmp.ne.s32.totalorder %s95, %s96
    %p110 = scmp.eq.s32.totalorder %s15, 1
    %p111 = por %p109, %p110
    %p113 = scmp.ne.s32.totalorder %s96, %s112
    %p114 = scmp.eq.s32.totalorder %s15, 0
    %p115 = por %p113, %p114
    %p116 = scmp.le.s32.totalorder 1, %s9
    %p117 = scmp.lt.s32.totalorder %s9, 3
    %p118 = pnand %p116, %p117
    %p119 = pneg %p118
    // Predicated region
    $region9: #{forward.1} parent=5 // pred_check
      _
    $region10: #{forward.1} parent=5 // pred_check_branch
      %121 = sbr.rel (%p118) target = $region12
    $region11: #{forward.1} parent=5 // pred_region
      %s122 = ssub.s32 %s9, 1
      // Predicated region
      $region13: #{forward.1} parent=11 // pred_check
        %p123 = pneg %p56
      $region14: #{forward.1} parent=11 // pred_check_branch
        %125 = sbr.rel (%p123) target = $region16
      $region15: #{forward.1} parent=11 // pred_region
        _
      $region16: #{forward.1} parent=11 // pred_fallthru
        _
    $region12: #{forward.1} parent=5 // pred_fallthru
      _
    %p126 = scmp.lt.s32.totalorder %s9, 2
    // Predicated region
    $region17: #{forward.1} parent=5 // pred_check
      %p127 = pneg %p126
    $region18: #{forward.1} parent=5 // pred_check_branch
      %129 = sbr.rel (%p127) target = $region20
    $region19: #{forward.1} parent=5 // pred_region
      // Predicated region
      $region21: #{forward.1} parent=19 // pred_check
        %p130 = pneg %p29
      $region22: #{forward.1} parent=19 // pred_check_branch
        %132 = sbr.rel (%p130) target = $region24
      $region23: #{forward.1} parent=19 // pred_region
        %p133 = scmp.lt.s32.totalorder %s9, 1
        %s134 = scalar_select %p133, %s9, 1
        %s135 = smul.addr %s134, 2
        %s136 = scalar_lea.vmem %s0, %s135
      $region24: #{forward.1} parent=19 // pred_fallthru
        _
      // Predicated region
      $region25: #{forward.1} parent=19 // pred_check
        %p137 = pneg %p76
      $region26: #{forward.1} parent=19 // pred_check_branch
        %139 = sbr.rel (%p137) target = $region28
      $region27: #{forward.1} parent=19 // pred_region
        %p140 = scmp.lt.s32.totalorder %s9, 1
        %s141 = scalar_select %p140, %s9, 1
        %s142 = smul.addr %s141, 12
        %s143 = smul.addr %s142, 8
        %s144 = scalar_lea.vmem %s2, %s143
      $region28: #{forward.1} parent=19 // pred_fallthru
        _
    $region20: #{forward.1} parent=5 // pred_fallthru
      _
    %p145 = scmp.le.s32.totalorder 1, %s9
    %p146 = scmp.lt.s32.totalorder %s9, 3
    %p147 = pnand %p145, %p146
    %p148 = pneg %p147
    // Predicated region
    $region29: #{forward.1} parent=5 // pred_check
      _
    $region30: #{forward.1} parent=5 // pred_check_branch
      %150 = sbr.rel (%p147) target = $region32
    $region31: #{forward.1} parent=5 // pred_region
      %s151 = ssub.s32 %s9, 1
      %p152 = scmp.lt.s32.totalorder %s14, 1
      %s153 = scalar_select %p152, %s14, 1
      %s154 = smul.addr %s153, 2
      %s155 = scalar_lea.vmem %s0, %s154
      %p156 = pneg %p35
      %p157 = pneg %p32
      %p158 = pneg %p56
      %p159 = pneg %p53
      %p160 = scmp.lt.s32.totalorder %s14, 1
      %s161 = scalar_select %p160, %s14, 1
      %s162 = smul.addr %s161, 12
      %s163 = smul.addr %s162, 8
      %s164 = scalar_lea.vmem %s2, %s163
      %p165 = pneg %p82
      %p166 = pneg %p79
      %p167 = pneg %p108
      %p168 = pneg %p105
      %p169 = scmp.lt.s32.totalorder %s14, 1
      %s170 = scalar_select %p169, %s14, 1
      %s171 = smul.addr %s170, 8
      %s172 = smul.addr %s171, 4
      %s173 = scalar_lea.vmem %s3, %s172
      %p174 = scmp.lt.s32.totalorder %s14, 1
      %s175 = scalar_select %p174, %s14, 1
      %s176 = smul.addr %s175, 2
      %s177 = scalar_lea.vmem %s0, %s176
      %p178 = scmp.lt.s32.totalorder %s14, 1
      %s179 = scalar_select %p178, %s14, 1
      %s180 = smul.addr %s179, 12
      %s181 = smul.addr %s180, 8
      %s182 = scalar_lea.vmem %s2, %s181
      %p183 = scmp.lt.s32.totalorder %s14, 1
      %s184 = scalar_select %p183, %s14, 1
      %s185 = smul.addr %s184, 8
      %s186 = smul.addr %s185, 4
      %s187 = scalar_lea.vmem %s3, %s186
      %v188 = vld [vmem:[%s177] sm:$0x3]
      %v189 = vld [vmem:[%s1] sm:$0xff]
      %v190 = vld [vmem:[%s1 + $0x8] sm:$0xff]
      %v191 = vld [vmem:[%s1 + $0x10] sm:$0xff]
      %v192 = vld [vmem:[%s1 + $0x18] sm:$0xff]
      %v193 = vld [vmem:[%s1 + $0x20] sm:$0xff]
      %v194 = vld [vmem:[%s1 + $0x28] sm:$0xff]
      %v195 = vld [vmem:[%s1 + $0x30] sm:$0xff]
      %v196 = vld [vmem:[%s1 + $0x38] sm:$0xff]
      %v197 = vld [vmem:[%s1 + $0x40] sm:$0xff]
      %v198 = vld [vmem:[%s1 + $0x48] sm:$0xff]
      %v199 = vld [vmem:[%s1 + $0x50] sm:$0xff]
      %v200 = vld [vmem:[%s1 + $0x58] sm:$0xff]
      %v201 = vld [vmem:[%s1 + $0x60] sm:$0xff]
      %v202 = vld [vmem:[%s1 + $0x68] sm:$0xff]
      %v203 = vld [vmem:[%s1 + $0x70] sm:$0xff]
      %v204 = vld [vmem:[%s1 + $0x78] sm:$0xff]
      %v205 = vld [vmem:[%s1 + $0x80] sm:$0xff]
      %v206 = vld [vmem:[%s1 + $0x88] sm:$0xff]
      %v207 = vld [vmem:[%s1 + $0x90] sm:$0xff]
      %v208 = vld [vmem:[%s1 + $0x98] sm:$0xff]
      %v209 = vld [vmem:[%s1 + $0xa0] sm:$0xff]
      %v210 = vld [vmem:[%s1 + $0xa8] sm:$0xff]
      %v211 = vld [vmem:[%s1 + $0xb0] sm:$0xff]
      %v212 = vld [vmem:[%s1 + $0xb8] sm:$0xff]
      %v213 = vld [vmem:[%s1 + $0xc0] sm:$0xff]
      %v214 = vld [vmem:[%s1 + $0xc8] sm:$0xff]
      %v215 = vld [vmem:[%s1 + $0xd0] sm:$0xff]
      %v216 = vld [vmem:[%s1 + $0xd8] sm:$0xff]
      %v217 = vld [vmem:[%s1 + $0xe0] sm:$0xff]
      %v218 = vld [vmem:[%s1 + $0xe8] sm:$0xff]
      %v219 = vld [vmem:[%s1 + $0xf0] sm:$0xff]
      %v220 = vld [vmem:[%s1 + $0xf8] sm:$0xff]
      %v221 = vld [vmem:[%s1 + $0x100] sm:$0xff]
      %v222 = vld [vmem:[%s1 + $0x108] sm:$0xff]
      %v223 = vld [vmem:[%s1 + $0x110] sm:$0xff]
      %v224 = vld [vmem:[%s1 + $0x118] sm:$0xff]
      %v225 = vld [vmem:[%s1 + $0x120] sm:$0xff]
      %v226 = vld [vmem:[%s1 + $0x128] sm:$0xff]
      %v227 = vld [vmem:[%s1 + $0x130] sm:$0xff]
      %v228 = vld [vmem:[%s1 + $0x138] sm:$0xff]
      %v229 = vld [vmem:[%s1 + $0x140] sm:$0xff]
      %v230 = vld [vmem:[%s1 + $0x148] sm:$0xff]
      %v231 = vld [vmem:[%s1 + $0x150] sm:$0xff]
      %v232 = vld [vmem:[%s1 + $0x158] sm:$0xff]
      %v233 = vld [vmem:[%s1 + $0x160] sm:$0xff]
      %v234 = vld [vmem:[%s1 + $0x168] sm:$0xff]
      %v235 = vld [vmem:[%s1 + $0x170] sm:$0xff]
      %v236 = vld [vmem:[%s1 + $0x178] sm:$0xff]
      %v237 = vld [vmem:[%s1 + $0x180] sm:$0xff]
      %v238 = vld [vmem:[%s1 + $0x188] sm:$0xff]
      %v239 = vld [vmem:[%s1 + $0x190] sm:$0xff]
      %v240 = vld [vmem:[%s1 + $0x198] sm:$0xff]
      %v241 = vld [vmem:[%s1 + $0x1a0] sm:$0xff]
      %v242 = vld [vmem:[%s1 + $0x1a8] sm:$0xff]
      %v243 = vld [vmem:[%s1 + $0x1b0] sm:$0xff]
      %v244 = vld [vmem:[%s1 + $0x1b8] sm:$0xff]
      %v245 = vld [vmem:[%s1 + $0x1c0] sm:$0xff]
      %v246 = vld [vmem:[%s1 + $0x1c8] sm:$0xff]
      %v247 = vld [vmem:[%s1 + $0x1d0] sm:$0xff]
      %v248 = vld [vmem:[%s1 + $0x1d8] sm:$0xff]
      %v249 = vld [vmem:[%s1 + $0x1e0] sm:$0xff]
      %v250 = vld [vmem:[%s1 + $0x1e8] sm:$0xff]
      %v251 = vld [vmem:[%s1 + $0x1f0] sm:$0xff]
      %v252 = vld [vmem:[%s1 + $0x1f8] sm:$0xff]
      %v253 = vld [vmem:[%s1 + $0x200] sm:$0xff]
      %v254 = vld [vmem:[%s1 + $0x208] sm:$0xff]
      %v255 = vld [vmem:[%s1 + $0x210] sm:$0xff]
      %v256 = vld [vmem:[%s1 + $0x218] sm:$0xff]
      %v257 = vld [vmem:[%s1 + $0x220] sm:$0xff]
      %v258 = vld [vmem:[%s1 + $0x228] sm:$0xff]
      %v259 = vld [vmem:[%s1 + $0x230] sm:$0xff]
      %v260 = vld [vmem:[%s1 + $0x238] sm:$0xff]
      %vm261 = vcmask 588800
      %v263 = vsel %vm261, %v188, 0
      %265 = vmatprep.subr.mxu0 %v190
      %266 = vmatpush1.msra.mxu0 %v189
      %267 = vmatprep.subr.mxu0 %v198
      %268 = vmatpush1.msra.mxu0 %v197
      %269 = vmatprep.subr.mxu0 %v206
      %270 = vmatpush1.msra.mxu0 %v205
      %271 = vmatprep.subr.mxu0 %v214
      %272 = vmatpush1.msra.mxu0 %v213
      %273 = vmatprep.subr.mxu0 %v222
      %274 = vmatpush1.msra.mxu0 %v221
      %275 = vmatprep.subr.mxu0 %v230
      %276 = vmatpush1.msra.mxu0 %v229
      %277 = vmatprep.subr.mxu0 %v238
      %278 = vmatpush1.msra.mxu0 %v237
      %279 = vmatprep.subr.mxu0 %v246
      %280 = vmatpush1.msra.mxu0 %v245
      %281 = vmatprep.subr.mxu0 %v254
      %282 = vmatpush1.msra.mxu0 %v253
      %283 = vmatprep.subr.mxu0 0.0
      %284 = vmatpush1.msra.mxu0 0.0
      %285 = vmatprep.subr.mxu0 0.0
      %286 = vmatpush1.msra.mxu0 0.0
      %287 = vmatprep.subr.mxu0 0.0
      %288 = vmatpush1.msra.mxu0 0.0
      %289 = vmatprep.subr.mxu0 0.0
      %290 = vmatpush1.msra.mxu0 0.0
      %291 = vmatprep.subr.mxu0 0.0
      %292 = vmatpush1.msra.mxu0 0.0
      %293 = vmatprep.subr.mxu0 0.0
      %294 = vmatpush1.msra.mxu0 0.0
      %295 = vmatprep.subr.mxu0 0.0
      %296 = vmatpush1.msra.mxu0 0.0
      %297 = vmatprep.subr.mxu0 0.0
      %298 = vmatpush1.msra.mxu0 0.0
      %299 = vmatprep.subr.mxu0 0.0
      %300 = vmatpush1.msra.mxu0 0.0
      %301 = vmatprep.subr.mxu0 0.0
      %302 = vmatpush1.msra.mxu0 0.0
      %303 = vmatprep.subr.mxu0 0.0
      %304 = vmatpush1.msra.mxu0 0.0
      %305 = vmatprep.subr.mxu0 0.0
      %306 = vmatpush1.msra.mxu0 0.0
      %307 = vmatprep.subr.mxu0 0.0
      %308 = vmatpush1.msra.mxu0 0.0
      %309 = vmatprep.subr.mxu0 0.0
      %310 = vmatpush1.msra.mxu0 0.0
      %311 = vmatprep.subr.mxu0 0.0
      %312 = vmatpush1.msra.mxu0 0.0
      %313 = vmatprep.subr.mxu0 0.0
      %314 = vmatpush1.msra.mxu0 0.0
      %315 = vmatprep.subr.mxu0 0.0
      %316 = vmatpush1.msra.mxu0 0.0
      %317 = vmatprep.subr.mxu0 0.0
      %318 = vmatpush1.msra.mxu0 0.0
      %319 = vmatprep.subr.mxu0 0.0
      %320 = vmatpush1.msra.mxu0 0.0
      %321 = vmatprep.subr.mxu0 0.0
      %322 = vmatpush1.msra.mxu0 0.0
      %323 = vmatprep.subr.mxu0 0.0
      %324 = vmatpush1.msra.mxu0 0.0
      %325 = vmatprep.subr.mxu0 0.0
      %326 = vmatpush1.msra.mxu0 0.0
      %327 = vmatprep.subr.mxu0 0.0
      %328 = vmatpush1.msra.mxu0 0.0
      %329 = vmatprep.mubr.f32.mxu0 0.0
      %330 = vmatmul.mubr.f32.gmra.mrb[0].mxu0 %v263
      %v331 = vpop.f32.mrb[0].mxu0
      %v332 = vadd.f32 0.0, %v331
      %v333 = vpop.f32.mrb[0].mxu0
      %v334 = vadd.f32 0.0, %v333
      %335 = vdwg.mxu0
      %336 = vmatprep.subr.mxu0 %v192
      %337 = vmatpush1.msra.mxu0 %v191
      %338 = vmatprep.subr.mxu0 %v200
      %339 = vmatpush1.msra.mxu0 %v199
      %340 = vmatprep.subr.mxu0 %v208
      %341 = vmatpush1.msra.mxu0 %v207
      %342 = vmatprep.subr.mxu0 %v216
      %343 = vmatpush1.msra.mxu0 %v215
      %344 = vmatprep.subr.mxu0 %v224
      %345 = vmatpush1.msra.mxu0 %v223
      %346 = vmatprep.subr.mxu0 %v232
      %347 = vmatpush1.msra.mxu0 %v231
      %348 = vmatprep.subr.mxu0 %v240
      %349 = vmatpush1.msra.mxu0 %v239
      %350 = vmatprep.subr.mxu0 %v248
      %351 = vmatpush1.msra.mxu0 %v247
      %352 = vmatprep.subr.mxu0 %v256
      %353 = vmatpush1.msra.mxu0 %v255
      %354 = vmatprep.subr.mxu0 0.0
      %355 = vmatpush1.msra.mxu0 0.0
      %356 = vmatprep.subr.mxu0 0.0
      %357 = vmatpush1.msra.mxu0 0.0
      %358 = vmatprep.subr.mxu0 0.0
      %359 = vmatpush1.msra.mxu0 0.0
      %360 = vmatprep.subr.mxu0 0.0
      %361 = vmatpush1.msra.mxu0 0.0
      %362 = vmatprep.subr.mxu0 0.0
      %363 = vmatpush1.msra.mxu0 0.0
      %364 = vmatprep.subr.mxu0 0.0
      %365 = vmatpush1.msra.mxu0 0.0
      %366 = vmatprep.subr.mxu0 0.0
      %367 = vmatpush1.msra.mxu0 0.0
      %368 = vmatprep.subr.mxu0 0.0
      %369 = vmatpush1.msra.mxu0 0.0
      %370 = vmatprep.subr.mxu0 0.0
      %371 = vmatpush1.msra.mxu0 0.0
      %372 = vmatprep.subr.mxu0 0.0
      %373 = vmatpush1.msra.mxu0 0.0
      %374 = vmatprep.subr.mxu0 0.0
      %375 = vmatpush1.msra.mxu0 0.0
      %376 = vmatprep.subr.mxu0 0.0
      %377 = vmatpush1.msra.mxu0 0.0
      %378 = vmatprep.subr.mxu0 0.0
      %379 = vmatpush1.msra.mxu0 0.0
      %380 = vmatprep.subr.mxu0 0.0
      %381 = vmatpush1.msra.mxu0 0.0
      %382 = vmatprep.subr.mxu0 0.0
      %383 = vmatpush1.msra.mxu0 0.0
      %384 = vmatprep.subr.mxu0 0.0
      %385 = vmatpush1.msra.mxu0 0.0
      %386 = vmatprep.subr.mxu0 0.0
      %387 = vmatpush1.msra.mxu0 0.0
      %388 = vmatprep.subr.mxu0 0.0
      %389 = vmatpush1.msra.mxu0 0.0
      %390 = vmatprep.subr.mxu0 0.0
      %391 = vmatpush1.msra.mxu0 0.0
      %392 = vmatprep.subr.mxu0 0.0
      %393 = vmatpush1.msra.mxu0 0.0
      %394 = vmatprep.subr.mxu0 0.0
      %395 = vmatpush1.msra.mxu0 0.0
      %396 = vmatprep.subr.mxu0 0.0
      %397 = vmatpush1.msra.mxu0 0.0
      %398 = vmatprep.subr.mxu0 0.0
      %399 = vmatpush1.msra.mxu0 0.0
      %400 = vmatprep.mubr.f32.mxu0 0.0
      %401 = vmatmul.mubr.f32.gmra.mrb[0].mxu0 %v263
      %v402 = vpop.f32.mrb[0].mxu0
      %v403 = vadd.f32 0.0, %v402
      %v404 = vpop.f32.mrb[0].mxu0
      %v405 = vadd.f32 0.0, %v404
      %406 = vdwg.mxu0
      %407 = vmatprep.subr.mxu0 %v194
      %408 = vmatpush1.msra.mxu0 %v193
      %409 = vmatprep.subr.mxu0 %v202
      %410 = vmatpush1.msra.mxu0 %v201
      %411 = vmatprep.subr.mxu0 %v210
      %412 = vmatpush1.msra.mxu0 %v209
      %413 = vmatprep.subr.mxu0 %v218
      %414 = vmatpush1.msra.mxu0 %v217
      %415 = vmatprep.subr.mxu0 %v226
      %416 = vmatpush1.msra.mxu0 %v225
      %417 = vmatprep.subr.mxu0 %v234
      %418 = vmatpush1.msra.mxu0 %v233
      %419 = vmatprep.subr.mxu0 %v242
      %420 = vmatpush1.msra.mxu0 %v241
      %421 = vmatprep.subr.mxu0 %v250
      %422 = vmatpush1.msra.mxu0 %v249
      %423 = vmatprep.subr.mxu0 %v258
      %424 = vmatpush1.msra.mxu0 %v257
      %425 = vmatprep.subr.mxu0 0.0
      %426 = vmatpush1.msra.mxu0 0.0
      %427 = vmatprep.subr.mxu0 0.0
      %428 = vmatpush1.msra.mxu0 0.0
      %429 = vmatprep.subr.mxu0 0.0
      %430 = vmatpush1.msra.mxu0 0.0
      %431 = vmatprep.subr.mxu0 0.0
      %432 = vmatpush1.msra.mxu0 0.0
      %433 = vmatprep.subr.mxu0 0.0
      %434 = vmatpush1.msra.mxu0 0.0
      %435 = vmatprep.subr.mxu0 0.0
      %436 = vmatpush1.msra.mxu0 0.0
      %437 = vmatprep.subr.mxu0 0.0
      %438 = vmatpush1.msra.mxu0 0.0
      %439 = vmatprep.subr.mxu0 0.0
      %440 = vmatpush1.msra.mxu0 0.0
      %441 = vmatprep.subr.mxu0 0.0
      %442 = vmatpush1.msra.mxu0 0.0
      %443 = vmatprep.subr.mxu0 0.0
      %444 = vmatpush1.msra.mxu0 0.0
      %445 = vmatprep.subr.mxu0 0.0
      %446 = vmatpush1.msra.mxu0 0.0
      %447 = vmatprep.subr.mxu0 0.0
      %448 = vmatpush1.msra.mxu0 0.0
      %449 = vmatprep.subr.mxu0 0.0
      %450 = vmatpush1.msra.mxu0 0.0
      %451 = vmatprep.subr.mxu0 0.0
      %452 = vmatpush1.msra.mxu0 0.0
      %453 = vmatprep.subr.mxu0 0.0
      %454 = vmatpush1.msra.mxu0 0.0
      %455 = vmatprep.subr.mxu0 0.0
      %456 = vmatpush1.msra.mxu0 0.0
      %457 = vmatprep.subr.mxu0 0.0
      %458 = vmatpush1.msra.mxu0 0.0
      %459 = vmatprep.subr.mxu0 0.0
      %460 = vmatpush1.msra.mxu0 0.0
      %461 = vmatprep.subr.mxu0 0.0
      %462 = vmatpush1.msra.mxu0 0.0
      %463 = vmatprep.subr.mxu0 0.0
      %464 = vmatpush1.msra.mxu0 0.0
      %465 = vmatprep.subr.mxu0 0.0
      %466 = vmatpush1.msra.mxu0 0.0
      %467 = vmatprep.subr.mxu0 0.0
      %468 = vmatpush1.msra.mxu0 0.0
      %469 = vmatprep.subr.mxu0 0.0
      %470 = vmatpush1.msra.mxu0 0.0
      %471 = vmatprep.mubr.f32.mxu0 0.0
      %472 = vmatmul.mubr.f32.gmra.mrb[0].mxu0 %v263
      %v473 = vpop.f32.mrb[0].mxu0
      %v474 = vadd.f32 0.0, %v473
      %v475 = vpop.f32.mrb[0].mxu0
      %v476 = vadd.f32 0.0, %v475
      %477 = vdwg.mxu0
      %478 = vmatprep.subr.mxu0 %v196
      %479 = vmatpush1.msra.mxu0 %v195
      %480 = vmatprep.subr.mxu0 %v204
      %481 = vmatpush1.msra.mxu0 %v203
      %482 = vmatprep.subr.mxu0 %v212
      %483 = vmatpush1.msra.mxu0 %v211
      %484 = vmatprep.subr.mxu0 %v220
      %485 = vmatpush1.msra.mxu0 %v219
      %486 = vmatprep.subr.mxu0 %v228
      %487 = vmatpush1.msra.mxu0 %v227
      %488 = vmatprep.subr.mxu0 %v236
      %489 = vmatpush1.msra.mxu0 %v235
      %490 = vmatprep.subr.mxu0 %v244
      %491 = vmatpush1.msra.mxu0 %v243
      %492 = vmatprep.subr.mxu0 %v252
      %493 = vmatpush1.msra.mxu0 %v251
      %494 = vmatprep.subr.mxu0 %v260
      %495 = vmatpush1.msra.mxu0 %v259
      %496 = vmatprep.subr.mxu0 0.0
      %497 = vmatpush1.msra.mxu0 0.0
      %498 = vmatprep.subr.mxu0 0.0
      %499 = vmatpush1.msra.mxu0 0.0
      %500 = vmatprep.subr.mxu0 0.0
      %501 = vmatpush1.msra.mxu0 0.0
      %502 = vmatprep.subr.mxu0 0.0
      %503 = vmatpush1.msra.mxu0 0.0
      %504 = vmatprep.subr.mxu0 0.0
      %505 = vmatpush1.msra.mxu0 0.0
      %506 = vmatprep.subr.mxu0 0.0
      %507 = vmatpush1.msra.mxu0 0.0
      %508 = vmatprep.subr.mxu0 0.0
      %509 = vmatpush1.msra.mxu0 0.0
      %510 = vmatprep.subr.mxu0 0.0
      %511 = vmatpush1.msra.mxu0 0.0
      %512 = vmatprep.subr.mxu0 0.0
      %513 = vmatpush1.msra.mxu0 0.0
      %514 = vmatprep.subr.mxu0 0.0
      %515 = vmatpush1.msra.mxu0 0.0
      %516 = vmatprep.subr.mxu0 0.0
      %517 = vmatpush1.msra.mxu0 0.0
      %518 = vmatprep.subr.mxu0 0.0
      %519 = vmatpush1.msra.mxu0 0.0
      %520 = vmatprep.subr.mxu0 0.0
      %521 = vmatpush1.msra.mxu0 0.0
      %522 = vmatprep.subr.mxu0 0.0
      %523 = vmatpush1.msra.mxu0 0.0
      %524 = vmatprep.subr.mxu0 0.0
      %525 = vmatpush1.msra.mxu0 0.0
      %526 = vmatprep.subr.mxu0 0.0
      %527 = vmatpush1.msra.mxu0 0.0
      %528 = vmatprep.subr.mxu0 0.0
      %529 = vmatpush1.msra.mxu0 0.0
      %530 = vmatprep.subr.mxu0 0.0
      %531 = vmatpush1.msra.mxu0 0.0
      %532 = vmatprep.subr.mxu0 0.0
      %533 = vmatpush1.msra.mxu0 0.0
      %534 = vmatprep.subr.mxu0 0.0
      %535 = vmatpush1.msra.mxu0 0.0
      %536 = vmatprep.subr.mxu0 0.0
      %537 = vmatpush1.msra.mxu0 0.0
      %538 = vmatprep.subr.mxu0 0.0
      %539 = vmatpush1.msra.mxu0 0.0
      %540 = vmatprep.subr.mxu0 0.0
      %541 = vmatpush1.msra.mxu0 0.0
      %542 = vmatprep.mubr.f32.mxu0 0.0
      %543 = vmatmul.mubr.f32.gmra.mrb[0].mxu0 %v263
      %v544 = vpop.f32.mrb[0].mxu0
      %v545 = vadd.f32 0.0, %v544
      %v546 = vpop.f32.mrb[0].mxu0
      %v547 = vadd.f32 0.0, %v546
      %548 = vdwg.mxu0
      %v549 = vmax.f32 %v332, 0.0
      %v550 = vmax.f32 %v334, 0.0
      %v551 = vmax.f32 %v403, 0.0
      %v552 = vmax.f32 %v405, 0.0
      %v553 = vmax.f32 %v474, 0.0
      %v554 = vmax.f32 %v476, 0.0
      %v555 = vmax.f32 %v545, 0.0
      %v556 = vmax.f32 %v547, 0.0
      %v557 = vmin.f32 %v549, 31.0
      %v558 = vmin.f32 %v550, 31.0
      %v559 = vmin.f32 %v551, 31.0
      %v560 = vmin.f32 %v552, 31.0
      %v561 = vmin.f32 %v553, 31.0
      %v562 = vmin.f32 %v554, 31.0
      %v563 = vmin.f32 %v555, 31.0
      %v564 = vmin.f32 %v556, 31.0
      %v565 = vfloor.f32 %v557
      %v566 = vfloor.f32 %v558
      %v567 = vfloor.f32 %v559
      %v568 = vfloor.f32 %v560
      %v569 = vfloor.f32 %v561
      %v570 = vfloor.f32 %v562
      %v571 = vfloor.f32 %v563
      %v572 = vfloor.f32 %v564
      %v573 = vsub.f32 %v557, %v565
      %v574 = vsub.f32 %v558, %v566
      %v575 = vsub.f32 %v559, %v567
      %v576 = vsub.f32 %v560, %v568
      %v577 = vsub.f32 %v561, %v569
      %v578 = vsub.f32 %v562, %v570
      %v579 = vsub.f32 %v563, %v571
      %v580 = vsub.f32 %v564, %v572
      %v581 = vcvt.f32.s32.to.zero.pseudo %v565
      %v582 = vcvt.f32.s32.to.zero.pseudo %v566
      %v583 = vcvt.f32.s32.to.zero.pseudo %v567
      %v584 = vcvt.f32.s32.to.zero.pseudo %v568
      %v585 = vcvt.f32.s32.to.zero.pseudo %v569
      %v586 = vcvt.f32.s32.to.zero.pseudo %v570
      %v587 = vcvt.f32.s32.to.zero.pseudo %v571
      %v588 = vcvt.f32.s32.to.zero.pseudo %v572
      %v589 = vadd.s32 %v581, 1
      %v590 = vadd.s32 %v582, 1
      %v591 = vadd.s32 %v583, 1
      %v592 = vadd.s32 %v584, 1
      %v593 = vadd.s32 %v585, 1
      %v594 = vadd.s32 %v586, 1
      %v595 = vadd.s32 %v587, 1
      %v596 = vadd.s32 %v588, 1
      %vm597 = vcmp.lt.s32.totalorder %v589, 31
      %v598 = vsel %vm597, %v589, 31
      %vm599 = vcmp.lt.s32.totalorder %v590, 31
      %v600 = vsel %vm599, %v590, 31
      %vm601 = vcmp.lt.s32.totalorder %v591, 31
      %v602 = vsel %vm601, %v591, 31
      %vm603 = vcmp.lt.s32.totalorder %v592, 31
      %v604 = vsel %vm603, %v592, 31
      %vm605 = vcmp.lt.s32.totalorder %v593, 31
      %v606 = vsel %vm605, %v593, 31
      %vm607 = vcmp.lt.s32.totalorder %v594, 31
      %v608 = vsel %vm607, %v594, 31
      %vm609 = vcmp.lt.s32.totalorder %v595, 31
      %v610 = vsel %vm609, %v595, 31
      %vm611 = vcmp.lt.s32.totalorder %v596, 31
      %v612 = vsel %vm611, %v596, 31
      %v613 = vlaneseq
      %v614 = vshrl.u32 %v613, 7
      %v615 = vadd.s32 %v614, 8
      %v616 = vadd.s32 %v614, 16
      %v617 = vadd.s32 %v614, 24
      %v618 = vlaneseq
      %v619 = vshrl.u32 %v618, 7
      %v620 = vsub.s32 0, %v619
      %v621 = vrot.slane %v581, %v620
      %v622 = vlaneseq
      %v623 = vshrl.u32 %v622, 7
      %v624 = vsub.s32 0, %v623
      %v625 = vrot.slane %v582, %v624
      %v626 = vlaneseq
      %v627 = vshrl.u32 %v626, 7
      %v628 = vsub.s32 0, %v627
      %v629 = vrot.slane %v583, %v628
      %v630 = vlaneseq
      %v631 = vshrl.u32 %v630, 7
      %v632 = vsub.s32 0, %v631
      %v633 = vrot.slane %v584, %v632
      %v634 = vlaneseq
      %v635 = vshrl.u32 %v634, 7
      %v636 = vsub.s32 0, %v635
      %v637 = vrot.slane %v585, %v636
      %v638 = vlaneseq
      %v639 = vshrl.u32 %v638, 7
      %v640 = vsub.s32 0, %v639
      %v641 = vrot.slane %v586, %v640
      %v642 = vlaneseq
      %v643 = vshrl.u32 %v642, 7
      %v644 = vsub.s32 0, %v643
      %v645 = vrot.slane %v587, %v644
      %v646 = vlaneseq
      %v647 = vshrl.u32 %v646, 7
      %v648 = vsub.s32 0, %v647
      %v649 = vrot.slane %v588, %v648
      %vm650 = vcmp.eq.s32.totalorder %v614, %v621
      %vm651 = vcmp.eq.s32.totalorder %v614, %v625
      %vm652 = vcmp.eq.s32.totalorder %v614, %v629
      %vm653 = vcmp.eq.s32.totalorder %v614, %v633
      %vm654 = vcmp.eq.s32.totalorder %v614, %v637
      %vm655 = vcmp.eq.s32.totalorder %v614, %v641
      %vm656 = vcmp.eq.s32.totalorder %v614, %v645
      %vm657 = vcmp.eq.s32.totalorder %v614, %v649
      %vm658 = vcmp.eq.s32.totalorder %v615, %v621
      %vm659 = vcmp.eq.s32.totalorder %v615, %v625
      %vm660 = vcmp.eq.s32.totalorder %v615, %v629
      %vm661 = vcmp.eq.s32.totalorder %v615, %v633
      %vm662 = vcmp.eq.s32.totalorder %v615, %v637
      %vm663 = vcmp.eq.s32.totalorder %v615, %v641
      %vm664 = vcmp.eq.s32.totalorder %v615, %v645
      %vm665 = vcmp.eq.s32.totalorder %v615, %v649
      %vm666 = vcmp.eq.s32.totalorder %v616, %v621
      %vm667 = vcmp.eq.s32.totalorder %v616, %v625
      %vm668 = vcmp.eq.s32.totalorder %v616, %v629
      %vm669 = vcmp.eq.s32.totalorder %v616, %v633
      %vm670 = vcmp.eq.s32.totalorder %v616, %v637
      %vm671 = vcmp.eq.s32.totalorder %v616, %v641
      %vm672 = vcmp.eq.s32.totalorder %v616, %v645
      %vm673 = vcmp.eq.s32.totalorder %v616, %v649
      %vm674 = vcmp.eq.s32.totalorder %v617, %v621
      %vm675 = vcmp.eq.s32.totalorder %v617, %v625
      %vm676 = vcmp.eq.s32.totalorder %v617, %v629
      %vm677 = vcmp.eq.s32.totalorder %v617, %v633
      %vm678 = vcmp.eq.s32.totalorder %v617, %v637
      %vm679 = vcmp.eq.s32.totalorder %v617, %v641
      %vm680 = vcmp.eq.s32.totalorder %v617, %v645
      %vm681 = vcmp.eq.s32.totalorder %v617, %v649
      %v682 = vsub.f32 1.0, %v573
      %v683 = vsub.f32 1.0, %v574
      %v684 = vsub.f32 1.0, %v575
      %v685 = vsub.f32 1.0, %v576
      %v686 = vsub.f32 1.0, %v577
      %v687 = vsub.f32 1.0, %v578
      %v688 = vsub.f32 1.0, %v579
      %v689 = vsub.f32 1.0, %v580
      %v690 = vlaneseq
      %v691 = vshrl.u32 %v690, 7
      %v692 = vsub.s32 0, %v691
      %v693 = vrot.slane %v682, %v692
      %v694 = vlaneseq
      %v695 = vshrl.u32 %v694, 7
      %v696 = vsub.s32 0, %v695
      %v697 = vrot.slane %v683, %v696
      %v698 = vlaneseq
      %v699 = vshrl.u32 %v698, 7
      %v700 = vsub.s32 0, %v699
      %v701 = vrot.slane %v684, %v700
      %v702 = vlaneseq
      %v703 = vshrl.u32 %v702, 7
      %v704 = vsub.s32 0, %v703
      %v705 = vrot.slane %v685, %v704
      %v706 = vlaneseq
      %v707 = vshrl.u32 %v706, 7
      %v708 = vsub.s32 0, %v707
      %v709 = vrot.slane %v686, %v708
      %v710 = vlaneseq
      %v711 = vshrl.u32 %v710, 7
      %v712 = vsub.s32 0, %v711
      %v713 = vrot.slane %v687, %v712
      %v714 = vlaneseq
      %v715 = vshrl.u32 %v714, 7
      %v716 = vsub.s32 0, %v715
      %v717 = vrot.slane %v688, %v716
      %v718 = vlaneseq
      %v719 = vshrl.u32 %v718, 7
      %v720 = vsub.s32 0, %v719
      %v721 = vrot.slane %v689, %v720
      %v722 = vsel %vm650, %v693, 0.0
      %v723 = vsel %vm651, %v697, 0.0
      %v724 = vsel %vm652, %v701, 0.0
      %v725 = vsel %vm653, %v705, 0.0
      %v726 = vsel %vm654, %v709, 0.0
      %v727 = vsel %vm655, %v713, 0.0
      %v728 = vsel %vm656, %v717, 0.0
      %v729 = vsel %vm657, %v721, 0.0
      %v730 = vsel %vm658, %v693, 0.0
      %v731 = vsel %vm659, %v697, 0.0
      %v732 = vsel %vm660, %v701, 0.0
      %v733 = vsel %vm661, %v705, 0.0
      %v734 = vsel %vm662, %v709, 0.0
      %v735 = vsel %vm663, %v713, 0.0
      %v736 = vsel %vm664, %v717, 0.0
      %v737 = vsel %vm665, %v721, 0.0
      %v738 = vsel %vm666, %v693, 0.0
      %v739 = vsel %vm667, %v697, 0.0
      %v740 = vsel %vm668, %v701, 0.0
      %v741 = vsel %vm669, %v705, 0.0
      %v742 = vsel %vm670, %v709, 0.0
      %v743 = vsel %vm671, %v713, 0.0
      %v744 = vsel %vm672, %v717, 0.0
      %v745 = vsel %vm673, %v721, 0.0
      %v746 = vsel %vm674, %v693, 0.0
      %v747 = vsel %vm675, %v697, 0.0
      %v748 = vsel %vm676, %v701, 0.0
      %v749 = vsel %vm677, %v705, 0.0
      %v750 = vsel %vm678, %v709, 0.0
      %v751 = vsel %vm679, %v713, 0.0
      %v752 = vsel %vm680, %v717, 0.0
      %v753 = vsel %vm681, %v721, 0.0
      %v754 = vlaneseq
      %v755 = vshrl.u32 %v754, 7
      %v756 = vsub.s32 0, %v755
      %v757 = vrot.slane %v598, %v756
      %v758 = vlaneseq
      %v759 = vshrl.u32 %v758, 7
      %v760 = vsub.s32 0, %v759
      %v761 = vrot.slane %v600, %v760
      %v762 = vlaneseq
      %v763 = vshrl.u32 %v762, 7
      %v764 = vsub.s32 0, %v763
      %v765 = vrot.slane %v602, %v764
      %v766 = vlaneseq
      %v767 = vshrl.u32 %v766, 7
      %v768 = vsub.s32 0, %v767
      %v769 = vrot.slane %v604, %v768
      %v770 = vlaneseq
      %v771 = vshrl.u32 %v770, 7
      %v772 = vsub.s32 0, %v771
      %v773 = vrot.slane %v606, %v772
      %v774 = vlaneseq
      %v775 = vshrl.u32 %v774, 7
      %v776 = vsub.s32 0, %v775
      %v777 = vrot.slane %v608, %v776
      %v778 = vlaneseq
      %v779 = vshrl.u32 %v778, 7
      %v780 = vsub.s32 0, %v779
      %v781 = vrot.slane %v610, %v780
      %v782 = vlaneseq
      %v783 = vshrl.u32 %v782, 7
      %v784 = vsub.s32 0, %v783
      %v785 = vrot.slane %v612, %v784
      %vm786 = vcmp.eq.s32.totalorder %v614, %v757
      %vm787 = vcmp.eq.s32.totalorder %v614, %v761
      %vm788 = vcmp.eq.s32.totalorder %v614, %v765
      %vm789 = vcmp.eq.s32.totalorder %v614, %v769
      %vm790 = vcmp.eq.s32.totalorder %v614, %v773
      %vm791 = vcmp.eq.s32.totalorder %v614, %v777
      %vm792 = vcmp.eq.s32.totalorder %v614, %v781
      %vm793 = vcmp.eq.s32.totalorder %v614, %v785
      %vm794 = vcmp.eq.s32.totalorder %v615, %v757
      %vm795 = vcmp.eq.s32.totalorder %v615, %v761
      %vm796 = vcmp.eq.s32.totalorder %v615, %v765
      %vm797 = vcmp.eq.s32.totalorder %v615, %v769
      %vm798 = vcmp.eq.s32.totalorder %v615, %v773
      %vm799 = vcmp.eq.s32.totalorder %v615, %v777
      %vm800 = vcmp.eq.s32.totalorder %v615, %v781
      %vm801 = vcmp.eq.s32.totalorder %v615, %v785
      %vm802 = vcmp.eq.s32.totalorder %v616, %v757
      %vm803 = vcmp.eq.s32.totalorder %v616, %v761
      %vm804 = vcmp.eq.s32.totalorder %v616, %v765
      %vm805 = vcmp.eq.s32.totalorder %v616, %v769
      %vm806 = vcmp.eq.s32.totalorder %v616, %v773
      %vm807 = vcmp.eq.s32.totalorder %v616, %v777
      %vm808 = vcmp.eq.s32.totalorder %v616, %v781
      %vm809 = vcmp.eq.s32.totalorder %v616, %v785
      %vm810 = vcmp.eq.s32.totalorder %v617, %v757
      %vm811 = vcmp.eq.s32.totalorder %v617, %v761
      %vm812 = vcmp.eq.s32.totalorder %v617, %v765
      %vm813 = vcmp.eq.s32.totalorder %v617, %v769
      %vm814 = vcmp.eq.s32.totalorder %v617, %v773
      %vm815 = vcmp.eq.s32.totalorder %v617, %v777
      %vm816 = vcmp.eq.s32.totalorder %v617, %v781
      %vm817 = vcmp.eq.s32.totalorder %v617, %v785
      %v818 = vlaneseq
      %v819 = vshrl.u32 %v818, 7
      %v820 = vsub.s32 0, %v819
      %v821 = vrot.slane %v573, %v820
      %v822 = vlaneseq
      %v823 = vshrl.u32 %v822, 7
      %v824 = vsub.s32 0, %v823
      %v825 = vrot.slane %v574, %v824
      %v826 = vlaneseq
      %v827 = vshrl.u32 %v826, 7
      %v828 = vsub.s32 0, %v827
      %v829 = vrot.slane %v575, %v828
      %v830 = vlaneseq
      %v831 = vshrl.u32 %v830, 7
      %v832 = vsub.s32 0, %v831
      %v833 = vrot.slane %v576, %v832
      %v834 = vlaneseq
      %v835 = vshrl.u32 %v834, 7
      %v836 = vsub.s32 0, %v835
      %v837 = vrot.slane %v577, %v836
      %v838 = vlaneseq
      %v839 = vshrl.u32 %v838, 7
      %v840 = vsub.s32 0, %v839
      %v841 = vrot.slane %v578, %v840
      %v842 = vlaneseq
      %v843 = vshrl.u32 %v842, 7
      %v844 = vsub.s32 0, %v843
      %v845 = vrot.slane %v579, %v844
      %v846 = vlaneseq
      %v847 = vshrl.u32 %v846, 7
      %v848 = vsub.s32 0, %v847
      %v849 = vrot.slane %v580, %v848
      %v850 = vsel %vm786, %v821, 0.0
      %v851 = vsel %vm787, %v825, 0.0
      %v852 = vsel %vm788, %v829, 0.0
      %v853 = vsel %vm789, %v833, 0.0
      %v854 = vsel %vm790, %v837, 0.0
      %v855 = vsel %vm791, %v841, 0.0
      %v856 = vsel %vm792, %v845, 0.0
      %v857 = vsel %vm793, %v849, 0.0
      %v858 = vsel %vm794, %v821, 0.0
      %v859 = vsel %vm795, %v825, 0.0
      %v860 = vsel %vm796, %v829, 0.0
      %v861 = vsel %vm797, %v833, 0.0
      %v862 = vsel %vm798, %v837, 0.0
      %v863 = vsel %vm799, %v841, 0.0
      %v864 = vsel %vm800, %v845, 0.0
      %v865 = vsel %vm801, %v849, 0.0
      %v866 = vsel %vm802, %v821, 0.0
      %v867 = vsel %vm803, %v825, 0.0
      %v868 = vsel %vm804, %v829, 0.0
      %v869 = vsel %vm805, %v833, 0.0
      %v870 = vsel %vm806, %v837, 0.0
      %v871 = vsel %vm807, %v841, 0.0
      %v872 = vsel %vm808, %v845, 0.0
      %v873 = vsel %vm809, %v849, 0.0
      %v874 = vsel %vm810, %v821, 0.0
      %v875 = vsel %vm811, %v825, 0.0
      %v876 = vsel %vm812, %v829, 0.0
      %v877 = vsel %vm813, %v833, 0.0
      %v878 = vsel %vm814, %v837, 0.0
      %v879 = vsel %vm815, %v841, 0.0
      %v880 = vsel %vm816, %v845, 0.0
      %v881 = vsel %vm817, %v849, 0.0
      %v882 = vadd.f32 %v722, %v850
      %v883 = vadd.f32 %v723, %v851
      %v884 = vadd.f32 %v724, %v852
      %v885 = vadd.f32 %v725, %v853
      %v886 = vadd.f32 %v726, %v854
      %v887 = vadd.f32 %v727, %v855
      %v888 = vadd.f32 %v728, %v856
      %v889 = vadd.f32 %v729, %v857
      %v890 = vadd.f32 %v730, %v858
      %v891 = vadd.f32 %v731, %v859
      %v892 = vadd.f32 %v732, %v860
      %v893 = vadd.f32 %v733, %v861
      %v894 = vadd.f32 %v734, %v862
      %v895 = vadd.f32 %v735, %v863
      %v896 = vadd.f32 %v736, %v864
      %v897 = vadd.f32 %v737, %v865
      %v898 = vadd.f32 %v738, %v866
      %v899 = vadd.f32 %v739, %v867
      %v900 = vadd.f32 %v740, %v868
      %v901 = vadd.f32 %v741, %v869
      %v902 = vadd.f32 %v742, %v870
      %v903 = vadd.f32 %v743, %v871
      %v904 = vadd.f32 %v744, %v872
      %v905 = vadd.f32 %v745, %v873
      %v906 = vadd.f32 %v746, %v874
      %v907 = vadd.f32 %v747, %v875
      %v908 = vadd.f32 %v748, %v876
      %v909 = vadd.f32 %v749, %v877
      %v910 = vadd.f32 %v750, %v878
      %v911 = vadd.f32 %v751, %v879
      %v912 = vadd.f32 %v752, %v880
      %v913 = vadd.f32 %v753, %v881
      %v914 = vld [vmem:[%s182] sm:$0xff]
      %v915 = vld [vmem:[%s182 + $0x8] sm:$0xff]
      %v916 = vld [vmem:[%s182 + $0x10] sm:$0xff]
      %v917 = vld [vmem:[%s182 + $0x18] sm:$0xff]
      %v918 = vld [vmem:[%s182 + $0x20] sm:$0xff]
      %v919 = vld [vmem:[%s182 + $0x28] sm:$0xff]
      %v920 = vld [vmem:[%s182 + $0x30] sm:$0xff]
      %v921 = vld [vmem:[%s182 + $0x38] sm:$0xff]
      %v922 = vld [vmem:[%s182 + $0x40] sm:$0xff]
      %v923 = vld [vmem:[%s182 + $0x48] sm:$0xff]
      %v924 = vld [vmem:[%s182 + $0x50] sm:$0xff]
      %v925 = vld [vmem:[%s182 + $0x58] sm:$0xff]
      %vm926 = vcmask 261120
      %v928 = vsel %vm926, %v914, 0
      %v931 = vsel %vm926, %v915, 0
      %v934 = vsel %vm926, %v916, 0
      %v937 = vsel %vm926, %v917, 0
      %v940 = vsel %vm926, %v918, 0
      %v943 = vsel %vm926, %v919, 0
      %v946 = vsel %vm926, %v920, 0
      %v949 = vsel %vm926, %v921, 0
      %v952 = vsel %vm926, %v922, 0
      %v955 = vsel %vm926, %v923, 0
      %v958 = vsel %vm926, %v924, 0
      %v961 = vsel %vm926, %v925, 0
      %963 = vmatprep.subr.mxu0 %v883
      %964 = vmatpush1.msra.mxu0 %v882
      %965 = vmatprep.subr.mxu0 %v891
      %966 = vmatpush1.msra.mxu0 %v890
      %967 = vmatprep.subr.mxu0 %v899
      %968 = vmatpush1.msra.mxu0 %v898
      %969 = vmatprep.subr.mxu0 %v907
      %970 = vmatpush1.msra.mxu0 %v906
      %971 = vmatprep.subr.mxu0 0.0
      %972 = vmatpush1.msra.mxu0 0.0
      %973 = vmatprep.subr.mxu0 0.0
      %974 = vmatpush1.msra.mxu0 0.0
      %975 = vmatprep.subr.mxu0 0.0
      %976 = vmatpush1.msra.mxu0 0.0
      %977 = vmatprep.subr.mxu0 0.0
      %978 = vmatpush1.msra.mxu0 0.0
      %979 = vmatprep.subr.mxu0 0.0
      %980 = vmatpush1.msra.mxu0 0.0
      %981 = vmatprep.subr.mxu0 0.0
      %982 = vmatpush1.msra.mxu0 0.0
      %983 = vmatprep.subr.mxu0 0.0
      %984 = vmatpush1.msra.mxu0 0.0
      %985 = vmatprep.subr.mxu0 0.0
      %986 = vmatpush1.msra.mxu0 0.0
      %987 = vmatprep.subr.mxu0 0.0
      %988 = vmatpush1.msra.mxu0 0.0
      %989 = vmatprep.subr.mxu0 0.0
      %990 = vmatpush1.msra.mxu0 0.0
      %991 = vmatprep.subr.mxu0 0.0
      %992 = vmatpush1.msra.mxu0 0.0
      %993 = vmatprep.subr.mxu0 0.0
      %994 = vmatpush1.msra.mxu0 0.0
      %995 = vmatprep.subr.mxu0 0.0
      %996 = vmatpush1.msra.mxu0 0.0
      %997 = vmatprep.subr.mxu0 0.0
      %998 = vmatpush1.msra.mxu0 0.0
      %999 = vmatprep.subr.mxu0 0.0
      %1000 = vmatpush1.msra.mxu0 0.0
      %1001 = vmatprep.subr.mxu0 0.0
      %1002 = vmatpush1.msra.mxu0 0.0
      %1003 = vmatprep.subr.mxu0 0.0
      %1004 = vmatpush1.msra.mxu0 0.0
      %1005 = vmatprep.subr.mxu0 0.0
      %1006 = vmatpush1.msra.mxu0 0.0
      %1007 = vmatprep.subr.mxu0 0.0
      %1008 = vmatpush1.msra.mxu0 0.0
      %1009 = vmatprep.subr.mxu0 0.0
      %1010 = vmatpush1.msra.mxu0 0.0
      %1011 = vmatprep.subr.mxu0 0.0
      %1012 = vmatpush1.msra.mxu0 0.0
      %1013 = vmatprep.subr.mxu0 0.0
      %1014 = vmatpush1.msra.mxu0 0.0
      %1015 = vmatprep.subr.mxu0 0.0
      %1016 = vmatpush1.msra.mxu0 0.0
      %1017 = vmatprep.subr.mxu0 0.0
      %1018 = vmatpush1.msra.mxu0 0.0
      %1019 = vmatprep.subr.mxu0 0.0
      %1020 = vmatpush1.msra.mxu0 0.0
      %1021 = vmatprep.subr.mxu0 0.0
      %1022 = vmatpush1.msra.mxu0 0.0
      %1023 = vmatprep.subr.mxu0 0.0
      %1024 = vmatpush1.msra.mxu0 0.0
      %1025 = vmatprep.subr.mxu0 0.0
      %1026 = vmatpush1.msra.mxu0 0.0
      %1027 = vmatprep.mubr.f32.mxu0 0.0
      %1028 = vmatmul.mubr.f32.gmra.mrb[0].mxu0 %v928
      %v1029 = vpop.f32.mrb[0].mxu0
      %v1030 = vadd.f32 0.0, %v1029
      %v1031 = vpop.f32.mrb[0].mxu0
      %v1032 = vadd.f32 0.0, %v1031
      %1033 = vmatprep.mubr.f32.mxu0 0.0
      %1034 = vmatmul.mubr.f32.gmra.mrb[0].mxu0 %v931
      %v1035 = vpop.f32.mrb[0].mxu0
      %v1036 = vadd.f32 0.0, %v1035
      %v1037 = vpop.f32.mrb[0].mxu0
      %v1038 = vadd.f32 0.0, %v1037
      %1039 = vmatprep.mubr.f32.mxu0 0.0
      %1040 = vmatmul.mubr.f32.gmra.mrb[0].mxu0 %v934
      %v1041 = vpop.f32.mrb[0].mxu0
      %v1042 = vadd.f32 0.0, %v1041
      %v1043 = vpop.f32.mrb[0].mxu0
      %v1044 = vadd.f32 0.0, %v1043
      %1045 = vmatprep.mubr.f32.mxu0 0.0
      %1046 = vmatmul.mubr.f32.gmra.mrb[0].mxu0 %v937
      %v1047 = vpop.f32.mrb[0].mxu0
      %v1048 = vadd.f32 0.0, %v1047
      %v1049 = vpop.f32.mrb[0].mxu0
      %v1050 = vadd.f32 0.0, %v1049
      %1051 = vmatprep.mubr.f32.mxu0 0.0
      %1052 = vmatmul.mubr.f32.gmra.mrb[0].mxu0 %v940
      %v1053 = vpop.f32.mrb[0].mxu0
      %v1054 = vadd.f32 0.0, %v1053
      %v1055 = vpop.f32.mrb[0].mxu0
      %v1056 = vadd.f32 0.0, %v1055
      %1057 = vmatprep.mubr.f32.mxu0 0.0
      %1058 = vmatmul.mubr.f32.gmra.mrb[0].mxu0 %v943
      %v1059 = vpop.f32.mrb[0].mxu0
      %v1060 = vadd.f32 0.0, %v1059
      %v1061 = vpop.f32.mrb[0].mxu0
      %v1062 = vadd.f32 0.0, %v1061
      %1063 = vmatprep.mubr.f32.mxu0 0.0
      %1064 = vmatmul.mubr.f32.gmra.mrb[0].mxu0 %v946
      %v1065 = vpop.f32.mrb[0].mxu0
      %v1066 = vadd.f32 0.0, %v1065
      %v1067 = vpop.f32.mrb[0].mxu0
      %v1068 = vadd.f32 0.0, %v1067
      %1069 = vmatprep.mubr.f32.mxu0 0.0
      %1070 = vmatmul.mubr.f32.gmra.mrb[0].mxu0 %v949
      %v1071 = vpop.f32.mrb[0].mxu0
      %v1072 = vadd.f32 0.0, %v1071
      %v1073 = vpop.f32.mrb[0].mxu0
      %v1074 = vadd.f32 0.0, %v1073
      %1075 = vmatprep.mubr.f32.mxu0 0.0
      %1076 = vmatmul.mubr.f32.gmra.mrb[0].mxu0 %v952
      %v1077 = vpop.f32.mrb[0].mxu0
      %v1078 = vadd.f32 0.0, %v1077
      %v1079 = vpop.f32.mrb[0].mxu0
      %v1080 = vadd.f32 0.0, %v1079
      %1081 = vmatprep.mubr.f32.mxu0 0.0
      %1082 = vmatmul.mubr.f32.gmra.mrb[0].mxu0 %v955
      %v1083 = vpop.f32.mrb[0].mxu0
      %v1084 = vadd.f32 0.0, %v1083
      %v1085 = vpop.f32.mrb[0].mxu0
      %v1086 = vadd.f32 0.0, %v1085
      %1087 = vmatprep.mubr.f32.mxu0 0.0
      %1088 = vmatmul.mubr.f32.gmra.mrb[0].mxu0 %v958
      %v1089 = vpop.f32.mrb[0].mxu0
      %v1090 = vadd.f32 0.0, %v1089
      %v1091 = vpop.f32.mrb[0].mxu0
      %v1092 = vadd.f32 0.0, %v1091
      %1093 = vmatprep.mubr.f32.mxu0 0.0
      %1094 = vmatmul.mubr.f32.gmra.mrb[0].mxu0 %v961
      %v1095 = vpop.f32.mrb[0].mxu0
      %v1096 = vadd.f32 0.0, %v1095
      %v1097 = vpop.f32.mrb[0].mxu0
      %v1098 = vadd.f32 0.0, %v1097
      %1099 = vdwg.mxu0
      %1100 = vmatprep.subr.mxu0 %v885
      %1101 = vmatpush1.msra.mxu0 %v884
      %1102 = vmatprep.subr.mxu0 %v893
      %1103 = vmatpush1.msra.mxu0 %v892
      %1104 = vmatprep.subr.mxu0 %v901
      %1105 = vmatpush1.msra.mxu0 %v900
      %1106 = vmatprep.subr.mxu0 %v909
      %1107 = vmatpush1.msra.mxu0 %v908
      %1108 = vmatprep.subr.mxu0 0.0
      %1109 = vmatpush1.msra.mxu0 0.0
      %1110 = vmatprep.subr.mxu0 0.0
      %1111 = vmatpush1.msra.mxu0 0.0
      %1112 = vmatprep.subr.mxu0 0.0
      %1113 = vmatpush1.msra.mxu0 0.0
      %1114 = vmatprep.subr.mxu0 0.0
      %1115 = vmatpush1.msra.mxu0 0.0
      %1116 = vmatprep.subr.mxu0 0.0
      %1117 = vmatpush1.msra.mxu0 0.0
      %1118 = vmatprep.subr.mxu0 0.0
      %1119 = vmatpush1.msra.mxu0 0.0
      %1120 = vmatprep.subr.mxu0 0.0
      %1121 = vmatpush1.msra.mxu0 0.0
      %1122 = vmatprep.subr.mxu0 0.0
      %1123 = vmatpush1.msra.mxu0 0.0
      %1124 = vmatprep.subr.mxu0 0.0
      %1125 = vmatpush1.msra.mxu0 0.0
      %1126 = vmatprep.subr.mxu0 0.0
      %1127 = vmatpush1.msra.mxu0 0.0
      %1128 = vmatprep.subr.mxu0 0.0
      %1129 = vmatpush1.msra.mxu0 0.0
      %1130 = vmatprep.subr.mxu0 0.0
      %1131 = vmatpush1.msra.mxu0 0.0
      %1132 = vmatprep.subr.mxu0 0.0
      %1133 = vmatpush1.msra.mxu0 0.0
      %1134 = vmatprep.subr.mxu0 0.0
      %1135 = vmatpush1.msra.mxu0 0.0
      %1136 = vmatprep.subr.mxu0 0.0
      %1137 = vmatpush1.msra.mxu0 0.0
      %1138 = vmatprep.subr.mxu0 0.0
      %1139 = vmatpush1.msra.mxu0 0.0
      %1140 = vmatprep.subr.mxu0 0.0
      %1141 = vmatpush1.msra.mxu0 0.0
      %1142 = vmatprep.subr.mxu0 0.0
      %1143 = vmatpush1.msra.mxu0 0.0
      %1144 = vmatprep.subr.mxu0 0.0
      %1145 = vmatpush1.msra.mxu0 0.0
      %1146 = vmatprep.subr.mxu0 0.0
      %1147 = vmatpush1.msra.mxu0 0.0
      %1148 = vmatprep.subr.mxu0 0.0
      %1149 = vmatpush1.msra.mxu0 0.0
      %1150 = vmatprep.subr.mxu0 0.0
      %1151 = vmatpush1.msra.mxu0 0.0
      %1152 = vmatprep.subr.mxu0 0.0
      %1153 = vmatpush1.msra.mxu0 0.0
      %1154 = vmatprep.subr.mxu0 0.0
      %1155 = vmatpush1.msra.mxu0 0.0
      %1156 = vmatprep.subr.mxu0 0.0
      %1157 = vmatpush1.msra.mxu0 0.0
      %1158 = vmatprep.subr.mxu0 0.0
      %1159 = vmatpush1.msra.mxu0 0.0
      %1160 = vmatprep.subr.mxu0 0.0
      %1161 = vmatpush1.msra.mxu0 0.0
      %1162 = vmatprep.subr.mxu0 0.0
      %1163 = vmatpush1.msra.mxu0 0.0
      %1164 = vmatprep.mubr.f32.mxu0 0.0
      %1165 = vmatmul.mubr.f32.gmra.mrb[0].mxu0 %v928
      %v1166 = vpop.f32.mrb[0].mxu0
      %v1167 = vadd.f32 0.0, %v1166
      %v1168 = vpop.f32.mrb[0].mxu0
      %v1169 = vadd.f32 0.0, %v1168
      %1170 = vmatprep.mubr.f32.mxu0 0.0
      %1171 = vmatmul.mubr.f32.gmra.mrb[0].mxu0 %v931
      %v1172 = vpop.f32.mrb[0].mxu0
      %v1173 = vadd.f32 0.0, %v1172
      %v1174 = vpop.f32.mrb[0].mxu0
      %v1175 = vadd.f32 0.0, %v1174
      %1176 = vmatprep.mubr.f32.mxu0 0.0
      %1177 = vmatmul.mubr.f32.gmra.mrb[0].mxu0 %v934
      %v1178 = vpop.f32.mrb[0].mxu0
      %v1179 = vadd.f32 0.0, %v1178
      %v1180 = vpop.f32.mrb[0].mxu0
      %v1181 = vadd.f32 0.0, %v1180
      %1182 = vmatprep.mubr.f32.mxu0 0.0
      %1183 = vmatmul.mubr.f32.gmra.mrb[0].mxu0 %v937
      %v1184 = vpop.f32.mrb[0].mxu0
      %v1185 = vadd.f32 0.0, %v1184
      %v1186 = vpop.f32.mrb[0].mxu0
      %v1187 = vadd.f32 0.0, %v1186
      %1188 = vmatprep.mubr.f32.mxu0 0.0
      %1189 = vmatmul.mubr.f32.gmra.mrb[0].mxu0 %v940
      %v1190 = vpop.f32.mrb[0].mxu0
      %v1191 = vadd.f32 0.0, %v1190
      %v1192 = vpop.f32.mrb[0].mxu0
      %v1193 = vadd.f32 0.0, %v1192
      %1194 = vmatprep.mubr.f32.mxu0 0.0
      %1195 = vmatmul.mubr.f32.gmra.mrb[0].mxu0 %v943
      %v1196 = vpop.f32.mrb[0].mxu0
      %v1197 = vadd.f32 0.0, %v1196
      %v1198 = vpop.f32.mrb[0].mxu0
      %v1199 = vadd.f32 0.0, %v1198
      %1200 = vmatprep.mubr.f32.mxu0 0.0
      %1201 = vmatmul.mubr.f32.gmra.mrb[0].mxu0 %v946
      %v1202 = vpop.f32.mrb[0].mxu0
      %v1203 = vadd.f32 0.0, %v1202
      %v1204 = vpop.f32.mrb[0].mxu0
      %v1205 = vadd.f32 0.0, %v1204
      %1206 = vmatprep.mubr.f32.mxu0 0.0
      %1207 = vmatmul.mubr.f32.gmra.mrb[0].mxu0 %v949
      %v1208 = vpop.f32.mrb[0].mxu0
      %v1209 = vadd.f32 0.0, %v1208
      %v1210 = vpop.f32.mrb[0].mxu0
      %v1211 = vadd.f32 0.0, %v1210
      %1212 = vmatprep.mubr.f32.mxu0 0.0
      %1213 = vmatmul.mubr.f32.gmra.mrb[0].mxu0 %v952
      %v1214 = vpop.f32.mrb[0].mxu0
      %v1215 = vadd.f32 0.0, %v1214
      %v1216 = vpop.f32.mrb[0].mxu0
      %v1217 = vadd.f32 0.0, %v1216
      %1218 = vmatprep.mubr.f32.mxu0 0.0
      %1219 = vmatmul.mubr.f32.gmra.mrb[0].mxu0 %v955
      %v1220 = vpop.f32.mrb[0].mxu0
      %v1221 = vadd.f32 0.0, %v1220
      %v1222 = vpop.f32.mrb[0].mxu0
      %v1223 = vadd.f32 0.0, %v1222
      %1224 = vmatprep.mubr.f32.mxu0 0.0
      %1225 = vmatmul.mubr.f32.gmra.mrb[0].mxu0 %v958
      %v1226 = vpop.f32.mrb[0].mxu0
      %v1227 = vadd.f32 0.0, %v1226
      %v1228 = vpop.f32.mrb[0].mxu0
      %v1229 = vadd.f32 0.0, %v1228
      %1230 = vmatprep.mubr.f32.mxu0 0.0
      %1231 = vmatmul.mubr.f32.gmra.mrb[0].mxu0 %v961
      %v1232 = vpop.f32.mrb[0].mxu0
      %v1233 = vadd.f32 0.0, %v1232
      %v1234 = vpop.f32.mrb[0].mxu0
      %v1235 = vadd.f32 0.0, %v1234
      %1236 = vdwg.mxu0
      %1237 = vmatprep.subr.mxu0 %v887
      %1238 = vmatpush1.msra.mxu0 %v886
      %1239 = vmatprep.subr.mxu0 %v895
      %1240 = vmatpush1.msra.mxu0 %v894
      %1241 = vmatprep.subr.mxu0 %v903
      %1242 = vmatpush1.msra.mxu0 %v902
      %1243 = vmatprep.subr.mxu0 %v911
      %1244 = vmatpush1.msra.mxu0 %v910
      %1245 = vmatprep.subr.mxu0 0.0
      %1246 = vmatpush1.msra.mxu0 0.0
      %1247 = vmatprep.subr.mxu0 0.0
      %1248 = vmatpush1.msra.mxu0 0.0
      %1249 = vmatprep.subr.mxu0 0.0
      %1250 = vmatpush1.msra.mxu0 0.0
      %1251 = vmatprep.subr.mxu0 0.0
      %1252 = vmatpush1.msra.mxu0 0.0
      %1253 = vmatprep.subr.mxu0 0.0
      %1254 = vmatpush1.msra.mxu0 0.0
      %1255 = vmatprep.subr.mxu0 0.0
      %1256 = vmatpush1.msra.mxu0 0.0
      %1257 = vmatprep.subr.mxu0 0.0
      %1258 = vmatpush1.msra.mxu0 0.0
      %1259 = vmatprep.subr.mxu0 0.0
      %1260 = vmatpush1.msra.mxu0 0.0
      %1261 = vmatprep.subr.mxu0 0.0
      %1262 = vmatpush1.msra.mxu0 0.0
      %1263 = vmatprep.subr.mxu0 0.0
      %1264 = vmatpush1.msra.mxu0 0.0
      %1265 = vmatprep.subr.mxu0 0.0
      %1266 = vmatpush1.msra.mxu0 0.0
      %1267 = vmatprep.subr.mxu0 0.0
      %1268 = vmatpush1.msra.mxu0 0.0
      %1269 = vmatprep.subr.mxu0 0.0
      %1270 = vmatpush1.msra.mxu0 0.0
      %1271 = vmatprep.subr.mxu0 0.0
      %1272 = vmatpush1.msra.mxu0 0.0
      %1273 = vmatprep.subr.mxu0 0.0
      %1274 = vmatpush1.msra.mxu0 0.0
      %1275 = vmatprep.subr.mxu0 0.0
      %1276 = vmatpush1.msra.mxu0 0.0
      %1277 = vmatprep.subr.mxu0 0.0
      %1278 = vmatpush1.msra.mxu0 0.0
      %1279 = vmatprep.subr.mxu0 0.0
      %1280 = vmatpush1.msra.mxu0 0.0
      %1281 = vmatprep.subr.mxu0 0.0
      %1282 = vmatpush1.msra.mxu0 0.0
      %1283 = vmatprep.subr.mxu0 0.0
      %1284 = vmatpush1.msra.mxu0 0.0
      %1285 = vmatprep.subr.mxu0 0.0
      %1286 = vmatpush1.msra.mxu0 0.0
      %1287 = vmatprep.subr.mxu0 0.0
      %1288 = vmatpush1.msra.mxu0 0.0
      %1289 = vmatprep.subr.mxu0 0.0
      %1290 = vmatpush1.msra.mxu0 0.0
      %1291 = vmatprep.subr.mxu0 0.0
      %1292 = vmatpush1.msra.mxu0 0.0
      %1293 = vmatprep.subr.mxu0 0.0
      %1294 = vmatpush1.msra.mxu0 0.0
      %1295 = vmatprep.subr.mxu0 0.0
      %1296 = vmatpush1.msra.mxu0 0.0
      %1297 = vmatprep.subr.mxu0 0.0
      %1298 = vmatpush1.msra.mxu0 0.0
      %1299 = vmatprep.subr.mxu0 0.0
      %1300 = vmatpush1.msra.mxu0 0.0
      %1301 = vmatprep.mubr.f32.mxu0 0.0
      %1302 = vmatmul.mubr.f32.gmra.mrb[0].mxu0 %v928
      %v1303 = vpop.f32.mrb[0].mxu0
      %v1304 = vadd.f32 0.0, %v1303
      %v1305 = vpop.f32.mrb[0].mxu0
      %v1306 = vadd.f32 0.0, %v1305
      %1307 = vmatprep.mubr.f32.mxu0 0.0
      %1308 = vmatmul.mubr.f32.gmra.mrb[0].mxu0 %v931
      %v1309 = vpop.f32.mrb[0].mxu0
      %v1310 = vadd.f32 0.0, %v1309
      %v1311 = vpop.f32.mrb[0].mxu0
      %v1312 = vadd.f32 0.0, %v1311
      %1313 = vmatprep.mubr.f32.mxu0 0.0
      %1314 = vmatmul.mubr.f32.gmra.mrb[0].mxu0 %v934
      %v1315 = vpop.f32.mrb[0].mxu0
      %v1316 = vadd.f32 0.0, %v1315
      %v1317 = vpop.f32.mrb[0].mxu0
      %v1318 = vadd.f32 0.0, %v1317
      %1319 = vmatprep.mubr.f32.mxu0 0.0
      %1320 = vmatmul.mubr.f32.gmra.mrb[0].mxu0 %v937
      %v1321 = vpop.f32.mrb[0].mxu0
      %v1322 = vadd.f32 0.0, %v1321
      %v1323 = vpop.f32.mrb[0].mxu0
      %v1324 = vadd.f32 0.0, %v1323
      %1325 = vmatprep.mubr.f32.mxu0 0.0
      %1326 = vmatmul.mubr.f32.gmra.mrb[0].mxu0 %v940
      %v1327 = vpop.f32.mrb[0].mxu0
      %v1328 = vadd.f32 0.0, %v1327
      %v1329 = vpop.f32.mrb[0].mxu0
      %v1330 = vadd.f32 0.0, %v1329
      %1331 = vmatprep.mubr.f32.mxu0 0.0
      %1332 = vmatmul.mubr.f32.gmra.mrb[0].mxu0 %v943
      %v1333 = vpop.f32.mrb[0].mxu0
      %v1334 = vadd.f32 0.0, %v1333
      %v1335 = vpop.f32.mrb[0].mxu0
      %v1336 = vadd.f32 0.0, %v1335
      %1337 = vmatprep.mubr.f32.mxu0 0.0
      %1338 = vmatmul.mubr.f32.gmra.mrb[0].mxu0 %v946
      %v1339 = vpop.f32.mrb[0].mxu0
      %v1340 = vadd.f32 0.0, %v1339
      %v1341 = vpop.f32.mrb[0].mxu0
      %v1342 = vadd.f32 0.0, %v1341
      %1343 = vmatprep.mubr.f32.mxu0 0.0
      %1344 = vmatmul.mubr.f32.gmra.mrb[0].mxu0 %v949
      %v1345 = vpop.f32.mrb[0].mxu0
      %v1346 = vadd.f32 0.0, %v1345
      %v1347 = vpop.f32.mrb[0].mxu0
      %v1348 = vadd.f32 0.0, %v1347
      %1349 = vmatprep.mubr.f32.mxu0 0.0
      %1350 = vmatmul.mubr.f32.gmra.mrb[0].mxu0 %v952
      %v1351 = vpop.f32.mrb[0].mxu0
      %v1352 = vadd.f32 0.0, %v1351
      %v1353 = vpop.f32.mrb[0].mxu0
      %v1354 = vadd.f32 0.0, %v1353
      %1355 = vmatprep.mubr.f32.mxu0 0.0
      %1356 = vmatmul.mubr.f32.gmra.mrb[0].mxu0 %v955
      %v1357 = vpop.f32.mrb[0].mxu0
      %v1358 = vadd.f32 0.0, %v1357
      %v1359 = vpop.f32.mrb[0].mxu0
      %v1360 = vadd.f32 0.0, %v1359
      %1361 = vmatprep.mubr.f32.mxu0 0.0
      %1362 = vmatmul.mubr.f32.gmra.mrb[0].mxu0 %v958
      %v1363 = vpop.f32.mrb[0].mxu0
      %v1364 = vadd.f32 0.0, %v1363
      %v1365 = vpop.f32.mrb[0].mxu0
      %v1366 = vadd.f32 0.0, %v1365
      %1367 = vmatprep.mubr.f32.mxu0 0.0
      %1368 = vmatmul.mubr.f32.gmra.mrb[0].mxu0 %v961
      %v1369 = vpop.f32.mrb[0].mxu0
      %v1370 = vadd.f32 0.0, %v1369
      %v1371 = vpop.f32.mrb[0].mxu0
      %v1372 = vadd.f32 0.0, %v1371
      %1373 = vdwg.mxu0
      %1374 = vmatprep.subr.mxu0 %v889
      %1375 = vmatpush1.msra.mxu0 %v888
      %1376 = vmatprep.subr.mxu0 %v897
      %1377 = vmatpush1.msra.mxu0 %v896
      %1378 = vmatprep.subr.mxu0 %v905
      %1379 = vmatpush1.msra.mxu0 %v904
      %1380 = vmatprep.subr.mxu0 %v913
      %1381 = vmatpush1.msra.mxu0 %v912
      %1382 = vmatprep.subr.mxu0 0.0
      %1383 = vmatpush1.msra.mxu0 0.0
      %1384 = vmatprep.subr.mxu0 0.0
      %1385 = vmatpush1.msra.mxu0 0.0
      %1386 = vmatprep.subr.mxu0 0.0
      %1387 = vmatpush1.msra.mxu0 0.0
      %1388 = vmatprep.subr.mxu0 0.0
      %1389 = vmatpush1.msra.mxu0 0.0
      %1390 = vmatprep.subr.mxu0 0.0
      %1391 = vmatpush1.msra.mxu0 0.0
      %1392 = vmatprep.subr.mxu0 0.0
      %1393 = vmatpush1.msra.mxu0 0.0
      %1394 = vmatprep.subr.mxu0 0.0
      %1395 = vmatpush1.msra.mxu0 0.0
      %1396 = vmatprep.subr.mxu0 0.0
      %1397 = vmatpush1.msra.mxu0 0.0
      %1398 = vmatprep.subr.mxu0 0.0
      %1399 = vmatpush1.msra.mxu0 0.0
      %1400 = vmatprep.subr.mxu0 0.0
      %1401 = vmatpush1.msra.mxu0 0.0
      %1402 = vmatprep.subr.mxu0 0.0
      %1403 = vmatpush1.msra.mxu0 0.0
      %1404 = vmatprep.subr.mxu0 0.0
      %1405 = vmatpush1.msra.mxu0 0.0
      %1406 = vmatprep.subr.mxu0 0.0
      %1407 = vmatpush1.msra.mxu0 0.0
      %1408 = vmatprep.subr.mxu0 0.0
      %1409 = vmatpush1.msra.mxu0 0.0
      %1410 = vmatprep.subr.mxu0 0.0
      %1411 = vmatpush1.msra.mxu0 0.0
      %1412 = vmatprep.subr.mxu0 0.0
      %1413 = vmatpush1.msra.mxu0 0.0
      %1414 = vmatprep.subr.mxu0 0.0
      %1415 = vmatpush1.msra.mxu0 0.0
      %1416 = vmatprep.subr.mxu0 0.0
      %1417 = vmatpush1.msra.mxu0 0.0
      %1418 = vmatprep.subr.mxu0 0.0
      %1419 = vmatpush1.msra.mxu0 0.0
      %1420 = vmatprep.subr.mxu0 0.0
      %1421 = vmatpush1.msra.mxu0 0.0
      %1422 = vmatprep.subr.mxu0 0.0
      %1423 = vmatpush1.msra.mxu0 0.0
      %1424 = vmatprep.subr.mxu0 0.0
      %1425 = vmatpush1.msra.mxu0 0.0
      %1426 = vmatprep.subr.mxu0 0.0
      %1427 = vmatpush1.msra.mxu0 0.0
      %1428 = vmatprep.subr.mxu0 0.0
      %1429 = vmatpush1.msra.mxu0 0.0
      %1430 = vmatprep.subr.mxu0 0.0
      %1431 = vmatpush1.msra.mxu0 0.0
      %1432 = vmatprep.subr.mxu0 0.0
      %1433 = vmatpush1.msra.mxu0 0.0
      %1434 = vmatprep.subr.mxu0 0.0
      %1435 = vmatpush1.msra.mxu0 0.0
      %1436 = vmatprep.subr.mxu0 0.0
      %1437 = vmatpush1.msra.mxu0 0.0
      %1438 = vmatprep.mubr.f32.mxu0 0.0
      %1439 = vmatmul.mubr.f32.gmra.mrb[0].mxu0 %v928
      %v1440 = vpop.f32.mrb[0].mxu0
      %v1441 = vadd.f32 0.0, %v1440
      %v1442 = vpop.f32.mrb[0].mxu0
      %v1443 = vadd.f32 0.0, %v1442
      %1444 = vmatprep.mubr.f32.mxu0 0.0
      %1445 = vmatmul.mubr.f32.gmra.mrb[0].mxu0 %v931
      %v1446 = vpop.f32.mrb[0].mxu0
      %v1447 = vadd.f32 0.0, %v1446
      %v1448 = vpop.f32.mrb[0].mxu0
      %v1449 = vadd.f32 0.0, %v1448
      %1450 = vmatprep.mubr.f32.mxu0 0.0
      %1451 = vmatmul.mubr.f32.gmra.mrb[0].mxu0 %v934
      %v1452 = vpop.f32.mrb[0].mxu0
      %v1453 = vadd.f32 0.0, %v1452
      %v1454 = vpop.f32.mrb[0].mxu0
      %v1455 = vadd.f32 0.0, %v1454
      %1456 = vmatprep.mubr.f32.mxu0 0.0
      %1457 = vmatmul.mubr.f32.gmra.mrb[0].mxu0 %v937
      %v1458 = vpop.f32.mrb[0].mxu0
      %v1459 = vadd.f32 0.0, %v1458
      %v1460 = vpop.f32.mrb[0].mxu0
      %v1461 = vadd.f32 0.0, %v1460
      %1462 = vmatprep.mubr.f32.mxu0 0.0
      %1463 = vmatmul.mubr.f32.gmra.mrb[0].mxu0 %v940
      %v1464 = vpop.f32.mrb[0].mxu0
      %v1465 = vadd.f32 0.0, %v1464
      %v1466 = vpop.f32.mrb[0].mxu0
      %v1467 = vadd.f32 0.0, %v1466
      %1468 = vmatprep.mubr.f32.mxu0 0.0
      %1469 = vmatmul.mubr.f32.gmra.mrb[0].mxu0 %v943
      %v1470 = vpop.f32.mrb[0].mxu0
      %v1471 = vadd.f32 0.0, %v1470
      %v1472 = vpop.f32.mrb[0].mxu0
      %v1473 = vadd.f32 0.0, %v1472
      %1474 = vmatprep.mubr.f32.mxu0 0.0
      %1475 = vmatmul.mubr.f32.gmra.mrb[0].mxu0 %v946
      %v1476 = vpop.f32.mrb[0].mxu0
      %v1477 = vadd.f32 0.0, %v1476
      %v1478 = vpop.f32.mrb[0].mxu0
      %v1479 = vadd.f32 0.0, %v1478
      %1480 = vmatprep.mubr.f32.mxu0 0.0
      %1481 = vmatmul.mubr.f32.gmra.mrb[0].mxu0 %v949
      %v1482 = vpop.f32.mrb[0].mxu0
      %v1483 = vadd.f32 0.0, %v1482
      %v1484 = vpop.f32.mrb[0].mxu0
      %v1485 = vadd.f32 0.0, %v1484
      %1486 = vmatprep.mubr.f32.mxu0 0.0
      %1487 = vmatmul.mubr.f32.gmra.mrb[0].mxu0 %v952
      %v1488 = vpop.f32.mrb[0].mxu0
      %v1489 = vadd.f32 0.0, %v1488
      %v1490 = vpop.f32.mrb[0].mxu0
      %v1491 = vadd.f32 0.0, %v1490
      %1492 = vmatprep.mubr.f32.mxu0 0.0
      %1493 = vmatmul.mubr.f32.gmra.mrb[0].mxu0 %v955
      %v1494 = vpop.f32.mrb[0].mxu0
      %v1495 = vadd.f32 0.0, %v1494
      %v1496 = vpop.f32.mrb[0].mxu0
      %v1497 = vadd.f32 0.0, %v1496
      %1498 = vmatprep.mubr.f32.mxu0 0.0
      %1499 = vmatmul.mubr.f32.gmra.mrb[0].mxu0 %v958
      %v1500 = vpop.f32.mrb[0].mxu0
      %v1501 = vadd.f32 0.0, %v1500
      %v1502 = vpop.f32.mrb[0].mxu0
      %v1503 = vadd.f32 0.0, %v1502
      %1504 = vmatprep.mubr.f32.mxu0 0.0
      %1505 = vmatmul.mubr.f32.gmra.mrb[0].mxu0 %v961
      %v1506 = vpop.f32.mrb[0].mxu0
      %v1507 = vadd.f32 0.0, %v1506
      %v1508 = vpop.f32.mrb[0].mxu0
      %v1509 = vadd.f32 0.0, %v1508
      %1510 = vdwg.mxu0
      %v1511 = vlaneseq
      %v1512 = vshrl.u32 %v1511, 7
      %v1513 = vsub.s32 1, %v1512
      %v1514 = vrot.slane %v581, %v1513
      %v1515 = vlaneseq
      %v1516 = vshrl.u32 %v1515, 7
      %v1517 = vsub.s32 1, %v1516
      %v1518 = vrot.slane %v582, %v1517
      %v1519 = vlaneseq
      %v1520 = vshrl.u32 %v1519, 7
      %v1521 = vsub.s32 1, %v1520
      %v1522 = vrot.slane %v583, %v1521
      %v1523 = vlaneseq
      %v1524 = vshrl.u32 %v1523, 7
      %v1525 = vsub.s32 1, %v1524
      %v1526 = vrot.slane %v584, %v1525
      %v1527 = vlaneseq
      %v1528 = vshrl.u32 %v1527, 7
      %v1529 = vsub.s32 1, %v1528
      %v1530 = vrot.slane %v585, %v1529
      %v1531 = vlaneseq
      %v1532 = vshrl.u32 %v1531, 7
      %v1533 = vsub.s32 1, %v1532
      %v1534 = vrot.slane %v586, %v1533
      %v1535 = vlaneseq
      %v1536 = vshrl.u32 %v1535, 7
      %v1537 = vsub.s32 1, %v1536
      %v1538 = vrot.slane %v587, %v1537
      %v1539 = vlaneseq
      %v1540 = vshrl.u32 %v1539, 7
      %v1541 = vsub.s32 1, %v1540
      %v1542 = vrot.slane %v588, %v1541
      %vm1543 = vcmp.eq.s32.totalorder %v614, %v1514
      %vm1544 = vcmp.eq.s32.totalorder %v614, %v1518
      %vm1545 = vcmp.eq.s32.totalorder %v614, %v1522
      %vm1546 = vcmp.eq.s32.totalorder %v614, %v1526
      %vm1547 = vcmp.eq.s32.totalorder %v614, %v1530
      %vm1548 = vcmp.eq.s32.totalorder %v614, %v1534
      %vm1549 = vcmp.eq.s32.totalorder %v614, %v1538
      %vm1550 = vcmp.eq.s32.totalorder %v614, %v1542
      %vm1551 = vcmp.eq.s32.totalorder %v615, %v1514
      %vm1552 = vcmp.eq.s32.totalorder %v615, %v1518
      %vm1553 = vcmp.eq.s32.totalorder %v615, %v1522
      %vm1554 = vcmp.eq.s32.totalorder %v615, %v1526
      %vm1555 = vcmp.eq.s32.totalorder %v615, %v1530
      %vm1556 = vcmp.eq.s32.totalorder %v615, %v1534
      %vm1557 = vcmp.eq.s32.totalorder %v615, %v1538
      %vm1558 = vcmp.eq.s32.totalorder %v615, %v1542
      %vm1559 = vcmp.eq.s32.totalorder %v616, %v1514
      %vm1560 = vcmp.eq.s32.totalorder %v616, %v1518
      %vm1561 = vcmp.eq.s32.totalorder %v616, %v1522
      %vm1562 = vcmp.eq.s32.totalorder %v616, %v1526
      %vm1563 = vcmp.eq.s32.totalorder %v616, %v1530
      %vm1564 = vcmp.eq.s32.totalorder %v616, %v1534
      %vm1565 = vcmp.eq.s32.totalorder %v616, %v1538
      %vm1566 = vcmp.eq.s32.totalorder %v616, %v1542
      %vm1567 = vcmp.eq.s32.totalorder %v617, %v1514
      %vm1568 = vcmp.eq.s32.totalorder %v617, %v1518
      %vm1569 = vcmp.eq.s32.totalorder %v617, %v1522
      %vm1570 = vcmp.eq.s32.totalorder %v617, %v1526
      %vm1571 = vcmp.eq.s32.totalorder %v617, %v1530
      %vm1572 = vcmp.eq.s32.totalorder %v617, %v1534
      %vm1573 = vcmp.eq.s32.totalorder %v617, %v1538
      %vm1574 = vcmp.eq.s32.totalorder %v617, %v1542
      %v1575 = vlaneseq
      %v1576 = vshrl.u32 %v1575, 7
      %v1577 = vsub.s32 1, %v1576
      %v1578 = vrot.slane %v682, %v1577
      %v1579 = vlaneseq
      %v1580 = vshrl.u32 %v1579, 7
      %v1581 = vsub.s32 1, %v1580
      %v1582 = vrot.slane %v683, %v1581
      %v1583 = vlaneseq
      %v1584 = vshrl.u32 %v1583, 7
      %v1585 = vsub.s32 1, %v1584
      %v1586 = vrot.slane %v684, %v1585
      %v1587 = vlaneseq
      %v1588 = vshrl.u32 %v1587, 7
      %v1589 = vsub.s32 1, %v1588
      %v1590 = vrot.slane %v685, %v1589
      %v1591 = vlaneseq
      %v1592 = vshrl.u32 %v1591, 7
      %v1593 = vsub.s32 1, %v1592
      %v1594 = vrot.slane %v686, %v1593
      %v1595 = vlaneseq
      %v1596 = vshrl.u32 %v1595, 7
      %v1597 = vsub.s32 1, %v1596
      %v1598 = vrot.slane %v687, %v1597
      %v1599 = vlaneseq
      %v1600 = vshrl.u32 %v1599, 7
      %v1601 = vsub.s32 1, %v1600
      %v1602 = vrot.slane %v688, %v1601
      %v1603 = vlaneseq
      %v1604 = vshrl.u32 %v1603, 7
      %v1605 = vsub.s32 1, %v1604
      %v1606 = vrot.slane %v689, %v1605
      %v1607 = vsel %vm1543, %v1578, 0.0
      %v1608 = vsel %vm1544, %v1582, 0.0
      %v1609 = vsel %vm1545, %v1586, 0.0
      %v1610 = vsel %vm1546, %v1590, 0.0
      %v1611 = vsel %vm1547, %v1594, 0.0
      %v1612 = vsel %vm1548, %v1598, 0.0
      %v1613 = vsel %vm1549, %v1602, 0.0
      %v1614 = vsel %vm1550, %v1606, 0.0
      %v1615 = vsel %vm1551, %v1578, 0.0
      %v1616 = vsel %vm1552, %v1582, 0.0
      %v1617 = vsel %vm1553, %v1586, 0.0
      %v1618 = vsel %vm1554, %v1590, 0.0
      %v1619 = vsel %vm1555, %v1594, 0.0
      %v1620 = vsel %vm1556, %v1598, 0.0
      %v1621 = vsel %vm1557, %v1602, 0.0
      %v1622 = vsel %vm1558, %v1606, 0.0
      %v1623 = vsel %vm1559, %v1578, 0.0
      %v1624 = vsel %vm1560, %v1582, 0.0
      %v1625 = vsel %vm1561, %v1586, 0.0
      %v1626 = vsel %vm1562, %v1590, 0.0
      %v1627 = vsel %vm1563, %v1594, 0.0
      %v1628 = vsel %vm1564, %v1598, 0.0
      %v1629 = vsel %vm1565, %v1602, 0.0
      %v1630 = vsel %vm1566, %v1606, 0.0
      %v1631 = vsel %vm1567, %v1578, 0.0
      %v1632 = vsel %vm1568, %v1582, 0.0
      %v1633 = vsel %vm1569, %v1586, 0.0
      %v1634 = vsel %vm1570, %v1590, 0.0
      %v1635 = vsel %vm1571, %v1594, 0.0
      %v1636 = vsel %vm1572, %v1598, 0.0
      %v1637 = vsel %vm1573, %v1602, 0.0
      %v1638 = vsel %vm1574, %v1606, 0.0
      %v1639 = vlaneseq
      %v1640 = vshrl.u32 %v1639, 7
      %v1641 = vsub.s32 1, %v1640
      %v1642 = vrot.slane %v598, %v1641
      %v1643 = vlaneseq
      %v1644 = vshrl.u32 %v1643, 7
      %v1645 = vsub.s32 1, %v1644
      %v1646 = vrot.slane %v600, %v1645
      %v1647 = vlaneseq
      %v1648 = vshrl.u32 %v1647, 7
      %v1649 = vsub.s32 1, %v1648
      %v1650 = vrot.slane %v602, %v1649
      %v1651 = vlaneseq
      %v1652 = vshrl.u32 %v1651, 7
      %v1653 = vsub.s32 1, %v1652
      %v1654 = vrot.slane %v604, %v1653
      %v1655 = vlaneseq
      %v1656 = vshrl.u32 %v1655, 7
      %v1657 = vsub.s32 1, %v1656
      %v1658 = vrot.slane %v606, %v1657
      %v1659 = vlaneseq
      %v1660 = vshrl.u32 %v1659, 7
      %v1661 = vsub.s32 1, %v1660
      %v1662 = vrot.slane %v608, %v1661
      %v1663 = vlaneseq
      %v1664 = vshrl.u32 %v1663, 7
      %v1665 = vsub.s32 1, %v1664
      %v1666 = vrot.slane %v610, %v1665
      %v1667 = vlaneseq
      %v1668 = vshrl.u32 %v1667, 7
      %v1669 = vsub.s32 1, %v1668
      %v1670 = vrot.slane %v612, %v1669
      %vm1671 = vcmp.eq.s32.totalorder %v614, %v1642
      %vm1672 = vcmp.eq.s32.totalorder %v614, %v1646
      %vm1673 = vcmp.eq.s32.totalorder %v614, %v1650
      %vm1674 = vcmp.eq.s32.totalorder %v614, %v1654
      %vm1675 = vcmp.eq.s32.totalorder %v614, %v1658
      %vm1676 = vcmp.eq.s32.totalorder %v614, %v1662
      %vm1677 = vcmp.eq.s32.totalorder %v614, %v1666
      %vm1678 = vcmp.eq.s32.totalorder %v614, %v1670
      %vm1679 = vcmp.eq.s32.totalorder %v615, %v1642
      %vm1680 = vcmp.eq.s32.totalorder %v615, %v1646
      %vm1681 = vcmp.eq.s32.totalorder %v615, %v1650
      %vm1682 = vcmp.eq.s32.totalorder %v615, %v1654
      %vm1683 = vcmp.eq.s32.totalorder %v615, %v1658
      %vm1684 = vcmp.eq.s32.totalorder %v615, %v1662
      %vm1685 = vcmp.eq.s32.totalorder %v615, %v1666
      %vm1686 = vcmp.eq.s32.totalorder %v615, %v1670
      %vm1687 = vcmp.eq.s32.totalorder %v616, %v1642
      %vm1688 = vcmp.eq.s32.totalorder %v616, %v1646
      %vm1689 = vcmp.eq.s32.totalorder %v616, %v1650
      %vm1690 = vcmp.eq.s32.totalorder %v616, %v1654
      %vm1691 = vcmp.eq.s32.totalorder %v616, %v1658
      %vm1692 = vcmp.eq.s32.totalorder %v616, %v1662
      %vm1693 = vcmp.eq.s32.totalorder %v616, %v1666
      %vm1694 = vcmp.eq.s32.totalorder %v616, %v1670
      %vm1695 = vcmp.eq.s32.totalorder %v617, %v1642
      %vm1696 = vcmp.eq.s32.totalorder %v617, %v1646
      %vm1697 = vcmp.eq.s32.totalorder %v617, %v1650
      %vm1698 = vcmp.eq.s32.totalorder %v617, %v1654
      %vm1699 = vcmp.eq.s32.totalorder %v617, %v1658
      %vm1700 = vcmp.eq.s32.totalorder %v617, %v1662
      %vm1701 = vcmp.eq.s32.totalorder %v617, %v1666
      %vm1702 = vcmp.eq.s32.totalorder %v617, %v1670
      %v1703 = vlaneseq
      %v1704 = vshrl.u32 %v1703, 7
      %v1705 = vsub.s32 1, %v1704
      %v1706 = vrot.slane %v573, %v1705
      %v1707 = vlaneseq
      %v1708 = vshrl.u32 %v1707, 7
      %v1709 = vsub.s32 1, %v1708
      %v1710 = vrot.slane %v574, %v1709
      %v1711 = vlaneseq
      %v1712 = vshrl.u32 %v1711, 7
      %v1713 = vsub.s32 1, %v1712
      %v1714 = vrot.slane %v575, %v1713
      %v1715 = vlaneseq
      %v1716 = vshrl.u32 %v1715, 7
      %v1717 = vsub.s32 1, %v1716
      %v1718 = vrot.slane %v576, %v1717
      %v1719 = vlaneseq
      %v1720 = vshrl.u32 %v1719, 7
      %v1721 = vsub.s32 1, %v1720
      %v1722 = vrot.slane %v577, %v1721
      %v1723 = vlaneseq
      %v1724 = vshrl.u32 %v1723, 7
      %v1725 = vsub.s32 1, %v1724
      %v1726 = vrot.slane %v578, %v1725
      %v1727 = vlaneseq
      %v1728 = vshrl.u32 %v1727, 7
      %v1729 = vsub.s32 1, %v1728
      %v1730 = vrot.slane %v579, %v1729
      %v1731 = vlaneseq
      %v1732 = vshrl.u32 %v1731, 7
      %v1733 = vsub.s32 1, %v1732
      %v1734 = vrot.slane %v580, %v1733
      %v1735 = vsel %vm1671, %v1706, 0.0
      %v1736 = vsel %vm1672, %v1710, 0.0
      %v1737 = vsel %vm1673, %v1714, 0.0
      %v1738 = vsel %vm1674, %v1718, 0.0
      %v1739 = vsel %vm1675, %v1722, 0.0
      %v1740 = vsel %vm1676, %v1726, 0.0
      %v1741 = vsel %vm1677, %v1730, 0.0
      %v1742 = vsel %vm1678, %v1734, 0.0
      %v1743 = vsel %vm1679, %v1706, 0.0
      %v1744 = vsel %vm1680, %v1710, 0.0
      %v1745 = vsel %vm1681, %v1714, 0.0
      %v1746 = vsel %vm1682, %v1718, 0.0
      %v1747 = vsel %vm1683, %v1722, 0.0
      %v1748 = vsel %vm1684, %v1726, 0.0
      %v1749 = vsel %vm1685, %v1730, 0.0
      %v1750 = vsel %vm1686, %v1734, 0.0
      %v1751 = vsel %vm1687, %v1706, 0.0
      %v1752 = vsel %vm1688, %v1710, 0.0
      %v1753 = vsel %vm1689, %v1714, 0.0
      %v1754 = vsel %vm1690, %v1718, 0.0
      %v1755 = vsel %vm1691, %v1722, 0.0
      %v1756 = vsel %vm1692, %v1726, 0.0
      %v1757 = vsel %vm1693, %v1730, 0.0
      %v1758 = vsel %vm1694, %v1734, 0.0
      %v1759 = vsel %vm1695, %v1706, 0.0
      %v1760 = vsel %vm1696, %v1710, 0.0
      %v1761 = vsel %vm1697, %v1714, 0.0
      %v1762 = vsel %vm1698, %v1718, 0.0
      %v1763 = vsel %vm1699, %v1722, 0.0
      %v1764 = vsel %vm1700, %v1726, 0.0
      %v1765 = vsel %vm1701, %v1730, 0.0
      %v1766 = vsel %vm1702, %v1734, 0.0
      %v1767 = vadd.f32 %v1607, %v1735
      %v1768 = vadd.f32 %v1608, %v1736
      %v1769 = vadd.f32 %v1609, %v1737
      %v1770 = vadd.f32 %v1610, %v1738
      %v1771 = vadd.f32 %v1611, %v1739
      %v1772 = vadd.f32 %v1612, %v1740
      %v1773 = vadd.f32 %v1613, %v1741
      %v1774 = vadd.f32 %v1614, %v1742
      %v1775 = vadd.f32 %v1615, %v1743
      %v1776 = vadd.f32 %v1616, %v1744
      %v1777 = vadd.f32 %v1617, %v1745
      %v1778 = vadd.f32 %v1618, %v1746
      %v1779 = vadd.f32 %v1619, %v1747
      %v1780 = vadd.f32 %v1620, %v1748
      %v1781 = vadd.f32 %v1621, %v1749
      %v1782 = vadd.f32 %v1622, %v1750
      %v1783 = vadd.f32 %v1623, %v1751
      %v1784 = vadd.f32 %v1624, %v1752
      %v1785 = vadd.f32 %v1625, %v1753
      %v1786 = vadd.f32 %v1626, %v1754
      %v1787 = vadd.f32 %v1627, %v1755
      %v1788 = vadd.f32 %v1628, %v1756
      %v1789 = vadd.f32 %v1629, %v1757
      %v1790 = vadd.f32 %v1630, %v1758
      %v1791 = vadd.f32 %v1631, %v1759
      %v1792 = vadd.f32 %v1632, %v1760
      %v1793 = vadd.f32 %v1633, %v1761
      %v1794 = vadd.f32 %v1634, %v1762
      %v1795 = vadd.f32 %v1635, %v1763
      %v1796 = vadd.f32 %v1636, %v1764
      %v1797 = vadd.f32 %v1637, %v1765
      %v1798 = vadd.f32 %v1638, %v1766
      %v1799 = vmul.f32 %v1030, %v1767
      %v1800 = vmul.f32 %v1032, %v1768
      %v1801 = vmul.f32 %v1167, %v1769
      %v1802 = vmul.f32 %v1169, %v1770
      %v1803 = vmul.f32 %v1304, %v1771
      %v1804 = vmul.f32 %v1306, %v1772
      %v1805 = vmul.f32 %v1441, %v1773
      %v1806 = vmul.f32 %v1443, %v1774
      %v1807 = vmul.f32 %v1036, %v1775
      %v1808 = vmul.f32 %v1038, %v1776
      %v1809 = vmul.f32 %v1173, %v1777
      %v1810 = vmul.f32 %v1175, %v1778
      %v1811 = vmul.f32 %v1310, %v1779
      %v1812 = vmul.f32 %v1312, %v1780
      %v1813 = vmul.f32 %v1447, %v1781
      %v1814 = vmul.f32 %v1449, %v1782
      %v1815 = vmul.f32 %v1042, %v1783
      %v1816 = vmul.f32 %v1044, %v1784
      %v1817 = vmul.f32 %v1179, %v1785
      %v1818 = vmul.f32 %v1181, %v1786
      %v1819 = vmul.f32 %v1316, %v1787
      %v1820 = vmul.f32 %v1318, %v1788
      %v1821 = vmul.f32 %v1453, %v1789
      %v1822 = vmul.f32 %v1455, %v1790
      %v1823 = vmul.f32 %v1048, %v1791
      %v1824 = vmul.f32 %v1050, %v1792
      %v1825 = vmul.f32 %v1185, %v1793
      %v1826 = vmul.f32 %v1187, %v1794
      %v1827 = vmul.f32 %v1322, %v1795
      %v1828 = vmul.f32 %v1324, %v1796
      %v1829 = vmul.f32 %v1459, %v1797
      %v1830 = vmul.f32 %v1461, %v1798
      %v1831 = vmul.f32 %v1054, %v1767
      %v1832 = vmul.f32 %v1056, %v1768
      %v1833 = vmul.f32 %v1191, %v1769
      %v1834 = vmul.f32 %v1193, %v1770
      %v1835 = vmul.f32 %v1328, %v1771
      %v1836 = vmul.f32 %v1330, %v1772
      %v1837 = vmul.f32 %v1465, %v1773
      %v1838 = vmul.f32 %v1467, %v1774
      %v1839 = vmul.f32 %v1060, %v1775
      %v1840 = vmul.f32 %v1062, %v1776
      %v1841 = vmul.f32 %v1197, %v1777
      %v1842 = vmul.f32 %v1199, %v1778
      %v1843 = vmul.f32 %v1334, %v1779
      %v1844 = vmul.f32 %v1336, %v1780
      %v1845 = vmul.f32 %v1471, %v1781
      %v1846 = vmul.f32 %v1473, %v1782
      %v1847 = vmul.f32 %v1066, %v1783
      %v1848 = vmul.f32 %v1068, %v1784
      %v1849 = vmul.f32 %v1203, %v1785
      %v1850 = vmul.f32 %v1205, %v1786
      %v1851 = vmul.f32 %v1340, %v1787
      %v1852 = vmul.f32 %v1342, %v1788
      %v1853 = vmul.f32 %v1477, %v1789
      %v1854 = vmul.f32 %v1479, %v1790
      %v1855 = vmul.f32 %v1072, %v1791
      %v1856 = vmul.f32 %v1074, %v1792
      %v1857 = vmul.f32 %v1209, %v1793
      %v1858 = vmul.f32 %v1211, %v1794
      %v1859 = vmul.f32 %v1346, %v1795
      %v1860 = vmul.f32 %v1348, %v1796
      %v1861 = vmul.f32 %v1483, %v1797
      %v1862 = vmul.f32 %v1485, %v1798
      %v1863 = vmul.f32 %v1078, %v1767
      %v1864 = vmul.f32 %v1080, %v1768
      %v1865 = vmul.f32 %v1215, %v1769
      %v1866 = vmul.f32 %v1217, %v1770
      %v1867 = vmul.f32 %v1352, %v1771
      %v1868 = vmul.f32 %v1354, %v1772
      %v1869 = vmul.f32 %v1489, %v1773
      %v1870 = vmul.f32 %v1491, %v1774
      %v1871 = vmul.f32 %v1084, %v1775
      %v1872 = vmul.f32 %v1086, %v1776
      %v1873 = vmul.f32 %v1221, %v1777
      %v1874 = vmul.f32 %v1223, %v1778
      %v1875 = vmul.f32 %v1358, %v1779
      %v1876 = vmul.f32 %v1360, %v1780
      %v1877 = vmul.f32 %v1495, %v1781
      %v1878 = vmul.f32 %v1497, %v1782
      %v1879 = vmul.f32 %v1090, %v1783
      %v1880 = vmul.f32 %v1092, %v1784
      %v1881 = vmul.f32 %v1227, %v1785
      %v1882 = vmul.f32 %v1229, %v1786
      %v1883 = vmul.f32 %v1364, %v1787
      %v1884 = vmul.f32 %v1366, %v1788
      %v1885 = vmul.f32 %v1501, %v1789
      %v1886 = vmul.f32 %v1503, %v1790
      %v1887 = vmul.f32 %v1096, %v1791
      %v1888 = vmul.f32 %v1098, %v1792
      %v1889 = vmul.f32 %v1233, %v1793
      %v1890 = vmul.f32 %v1235, %v1794
      %v1891 = vmul.f32 %v1370, %v1795
      %v1892 = vmul.f32 %v1372, %v1796
      %v1893 = vmul.f32 %v1507, %v1797
      %v1894 = vmul.f32 %v1509, %v1798
      %v1895 = vadd.f32 %v1799, %v1807
      %v1896 = vadd.f32 %v1895, %v1815
      %v1897 = vadd.f32 %v1896, %v1823
      %v1898 = vrot.slane %v1897, 4
      %v1899 = vadd.f32 %v1897, %v1898
      %v1900 = vrot.slane %v1899, 2
      %v1901 = vadd.f32 %v1899, %v1900
      %v1902 = vrot.slane %v1901, 1
      %v1903 = vadd.f32 %v1901, %v1902
      %v1904 = vadd.f32 %v1800, %v1808
      %v1905 = vadd.f32 %v1904, %v1816
      %v1906 = vadd.f32 %v1905, %v1824
      %v1907 = vrot.slane %v1906, 4
      %v1908 = vadd.f32 %v1906, %v1907
      %v1909 = vrot.slane %v1908, 2
      %v1910 = vadd.f32 %v1908, %v1909
      %v1911 = vrot.slane %v1910, 1
      %v1912 = vadd.f32 %v1910, %v1911
      %v1913 = vadd.f32 %v1801, %v1809
      %v1914 = vadd.f32 %v1913, %v1817
      %v1915 = vadd.f32 %v1914, %v1825
      %v1916 = vrot.slane %v1915, 4
      %v1917 = vadd.f32 %v1915, %v1916
      %v1918 = vrot.slane %v1917, 2
      %v1919 = vadd.f32 %v1917, %v1918
      %v1920 = vrot.slane %v1919, 1
      %v1921 = vadd.f32 %v1919, %v1920
      %v1922 = vadd.f32 %v1802, %v1810
      %v1923 = vadd.f32 %v1922, %v1818
      %v1924 = vadd.f32 %v1923, %v1826
      %v1925 = vrot.slane %v1924, 4
      %v1926 = vadd.f32 %v1924, %v1925
      %v1927 = vrot.slane %v1926, 2
      %v1928 = vadd.f32 %v1926, %v1927
      %v1929 = vrot.slane %v1928, 1
      %v1930 = vadd.f32 %v1928, %v1929
      %v1931 = vadd.f32 %v1803, %v1811
      %v1932 = vadd.f32 %v1931, %v1819
      %v1933 = vadd.f32 %v1932, %v1827
      %v1934 = vrot.slane %v1933, 4
      %v1935 = vadd.f32 %v1933, %v1934
      %v1936 = vrot.slane %v1935, 2
      %v1937 = vadd.f32 %v1935, %v1936
      %v1938 = vrot.slane %v1937, 1
      %v1939 = vadd.f32 %v1937, %v1938
      %v1940 = vadd.f32 %v1804, %v1812
      %v1941 = vadd.f32 %v1940, %v1820
      %v1942 = vadd.f32 %v1941, %v1828
      %v1943 = vrot.slane %v1942, 4
      %v1944 = vadd.f32 %v1942, %v1943
      %v1945 = vrot.slane %v1944, 2
      %v1946 = vadd.f32 %v1944, %v1945
      %v1947 = vrot.slane %v1946, 1
      %v1948 = vadd.f32 %v1946, %v1947
      %v1949 = vadd.f32 %v1805, %v1813
      %v1950 = vadd.f32 %v1949, %v1821
      %v1951 = vadd.f32 %v1950, %v1829
      %v1952 = vrot.slane %v1951, 4
      %v1953 = vadd.f32 %v1951, %v1952
      %v1954 = vrot.slane %v1953, 2
      %v1955 = vadd.f32 %v1953, %v1954
      %v1956 = vrot.slane %v1955, 1
      %v1957 = vadd.f32 %v1955, %v1956
      %v1958 = vadd.f32 %v1806, %v1814
      %v1959 = vadd.f32 %v1958, %v1822
      %v1960 = vadd.f32 %v1959, %v1830
      %v1961 = vrot.slane %v1960, 4
      %v1962 = vadd.f32 %v1960, %v1961
      %v1963 = vrot.slane %v1962, 2
      %v1964 = vadd.f32 %v1962, %v1963
      %v1965 = vrot.slane %v1964, 1
      %v1966 = vadd.f32 %v1964, %v1965
      %v1967 = vadd.f32 %v1831, %v1839
      %v1968 = vadd.f32 %v1967, %v1847
      %v1969 = vadd.f32 %v1968, %v1855
      %v1970 = vrot.slane %v1969, 4
      %v1971 = vadd.f32 %v1969, %v1970
      %v1972 = vrot.slane %v1971, 2
      %v1973 = vadd.f32 %v1971, %v1972
      %v1974 = vrot.slane %v1973, 1
      %v1975 = vadd.f32 %v1973, %v1974
      %v1976 = vadd.f32 %v1832, %v1840
      %v1977 = vadd.f32 %v1976, %v1848
      %v1978 = vadd.f32 %v1977, %v1856
      %v1979 = vrot.slane %v1978, 4
      %v1980 = vadd.f32 %v1978, %v1979
      %v1981 = vrot.slane %v1980, 2
      %v1982 = vadd.f32 %v1980, %v1981
      %v1983 = vrot.slane %v1982, 1
      %v1984 = vadd.f32 %v1982, %v1983
      %v1985 = vadd.f32 %v1833, %v1841
      %v1986 = vadd.f32 %v1985, %v1849
      %v1987 = vadd.f32 %v1986, %v1857
      %v1988 = vrot.slane %v1987, 4
      %v1989 = vadd.f32 %v1987, %v1988
      %v1990 = vrot.slane %v1989, 2
      %v1991 = vadd.f32 %v1989, %v1990
      %v1992 = vrot.slane %v1991, 1
      %v1993 = vadd.f32 %v1991, %v1992
      %v1994 = vadd.f32 %v1834, %v1842
      %v1995 = vadd.f32 %v1994, %v1850
      %v1996 = vadd.f32 %v1995, %v1858
      %v1997 = vrot.slane %v1996, 4
      %v1998 = vadd.f32 %v1996, %v1997
      %v1999 = vrot.slane %v1998, 2
      %v2000 = vadd.f32 %v1998, %v1999
      %v2001 = vrot.slane %v2000, 1
      %v2002 = vadd.f32 %v2000, %v2001
      %v2003 = vadd.f32 %v1835, %v1843
      %v2004 = vadd.f32 %v2003, %v1851
      %v2005 = vadd.f32 %v2004, %v1859
      %v2006 = vrot.slane %v2005, 4
      %v2007 = vadd.f32 %v2005, %v2006
      %v2008 = vrot.slane %v2007, 2
      %v2009 = vadd.f32 %v2007, %v2008
      %v2010 = vrot.slane %v2009, 1
      %v2011 = vadd.f32 %v2009, %v2010
      %v2012 = vadd.f32 %v1836, %v1844
      %v2013 = vadd.f32 %v2012, %v1852
      %v2014 = vadd.f32 %v2013, %v1860
      %v2015 = vrot.slane %v2014, 4
      %v2016 = vadd.f32 %v2014, %v2015
      %v2017 = vrot.slane %v2016, 2
      %v2018 = vadd.f32 %v2016, %v2017
      %v2019 = vrot.slane %v2018, 1
      %v2020 = vadd.f32 %v2018, %v2019
      %v2021 = vadd.f32 %v1837, %v1845
      %v2022 = vadd.f32 %v2021, %v1853
      %v2023 = vadd.f32 %v2022, %v1861
      %v2024 = vrot.slane %v2023, 4
      %v2025 = vadd.f32 %v2023, %v2024
      %v2026 = vrot.slane %v2025, 2
      %v2027 = vadd.f32 %v2025, %v2026
      %v2028 = vrot.slane %v2027, 1
      %v2029 = vadd.f32 %v2027, %v2028
      %v2030 = vadd.f32 %v1838, %v1846
      %v2031 = vadd.f32 %v2030, %v1854
      %v2032 = vadd.f32 %v2031, %v1862
      %v2033 = vrot.slane %v2032, 4
      %v2034 = vadd.f32 %v2032, %v2033
      %v2035 = vrot.slane %v2034, 2
      %v2036 = vadd.f32 %v2034, %v2035
      %v2037 = vrot.slane %v2036, 1
      %v2038 = vadd.f32 %v2036, %v2037
      %v2039 = vadd.f32 %v1863, %v1871
      %v2040 = vadd.f32 %v2039, %v1879
      %v2041 = vadd.f32 %v2040, %v1887
      %v2042 = vrot.slane %v2041, 4
      %v2043 = vadd.f32 %v2041, %v2042
      %v2044 = vrot.slane %v2043, 2
      %v2045 = vadd.f32 %v2043, %v2044
      %v2046 = vrot.slane %v2045, 1
      %v2047 = vadd.f32 %v2045, %v2046
      %v2048 = vadd.f32 %v1864, %v1872
      %v2049 = vadd.f32 %v2048, %v1880
      %v2050 = vadd.f32 %v2049, %v1888
      %v2051 = vrot.slane %v2050, 4
      %v2052 = vadd.f32 %v2050, %v2051
      %v2053 = vrot.slane %v2052, 2
      %v2054 = vadd.f32 %v2052, %v2053
      %v2055 = vrot.slane %v2054, 1
      %v2056 = vadd.f32 %v2054, %v2055
      %v2057 = vadd.f32 %v1865, %v1873
      %v2058 = vadd.f32 %v2057, %v1881
      %v2059 = vadd.f32 %v2058, %v1889
      %v2060 = vrot.slane %v2059, 4
      %v2061 = vadd.f32 %v2059, %v2060
      %v2062 = vrot.slane %v2061, 2
      %v2063 = vadd.f32 %v2061, %v2062
      %v2064 = vrot.slane %v2063, 1
      %v2065 = vadd.f32 %v2063, %v2064
      %v2066 = vadd.f32 %v1866, %v1874
      %v2067 = vadd.f32 %v2066, %v1882
      %v2068 = vadd.f32 %v2067, %v1890
      %v2069 = vrot.slane %v2068, 4
      %v2070 = vadd.f32 %v2068, %v2069
      %v2071 = vrot.slane %v2070, 2
      %v2072 = vadd.f32 %v2070, %v2071
      %v2073 = vrot.slane %v2072, 1
      %v2074 = vadd.f32 %v2072, %v2073
      %v2075 = vadd.f32 %v1867, %v1875
      %v2076 = vadd.f32 %v2075, %v1883
      %v2077 = vadd.f32 %v2076, %v1891
      %v2078 = vrot.slane %v2077, 4
      %v2079 = vadd.f32 %v2077, %v2078
      %v2080 = vrot.slane %v2079, 2
      %v2081 = vadd.f32 %v2079, %v2080
      %v2082 = vrot.slane %v2081, 1
      %v2083 = vadd.f32 %v2081, %v2082
      %v2084 = vadd.f32 %v1868, %v1876
      %v2085 = vadd.f32 %v2084, %v1884
      %v2086 = vadd.f32 %v2085, %v1892
      %v2087 = vrot.slane %v2086, 4
      %v2088 = vadd.f32 %v2086, %v2087
      %v2089 = vrot.slane %v2088, 2
      %v2090 = vadd.f32 %v2088, %v2089
      %v2091 = vrot.slane %v2090, 1
      %v2092 = vadd.f32 %v2090, %v2091
      %v2093 = vadd.f32 %v1869, %v1877
      %v2094 = vadd.f32 %v2093, %v1885
      %v2095 = vadd.f32 %v2094, %v1893
      %v2096 = vrot.slane %v2095, 4
      %v2097 = vadd.f32 %v2095, %v2096
      %v2098 = vrot.slane %v2097, 2
      %v2099 = vadd.f32 %v2097, %v2098
      %v2100 = vrot.slane %v2099, 1
      %v2101 = vadd.f32 %v2099, %v2100
      %v2102 = vadd.f32 %v1870, %v1878
      %v2103 = vadd.f32 %v2102, %v1886
      %v2104 = vadd.f32 %v2103, %v1894
      %v2105 = vrot.slane %v2104, 4
      %v2106 = vadd.f32 %v2104, %v2105
      %v2107 = vrot.slane %v2106, 2
      %v2108 = vadd.f32 %v2106, %v2107
      %v2109 = vrot.slane %v2108, 1
      %v2110 = vadd.f32 %v2108, %v2109
      %v2135 = vcombine.low %v1903, %v1912
      %v2136 = vcombine.low %v1921, %v1930
      %v2137 = vcombine.low %v1939, %v1948
      %v2138 = vcombine.low %v1957, %v1966
      %v2139 = vcombine.low %v1975, %v1984
      %v2140 = vcombine.low %v1993, %v2002
      %v2141 = vcombine.low %v2011, %v2020
      %v2142 = vcombine.low %v2029, %v2038
      %v2143 = vcombine.low %v2047, %v2056
      %v2144 = vcombine.low %v2065, %v2074
      %v2145 = vcombine.low %v2083, %v2092
      %v2146 = vcombine.low %v2101, %v2110
      %v2147 = vrot.slane %v2139, 7
      %vm2148 = vcmask 1041409
      %v2149 = vsel %vm2148, %v2147, %v2135
      %vm2150 = vcmask 1045509
      %v2151 = vsel %vm2150, %v2147, %v2149
      %v2152 = vrot.slane %v2143, 6
      %vm2153 = vcmask 1042434
      %v2154 = vsel %vm2153, %v2152, %v2151
      %vm2155 = vcmask 1046534
      %v2156 = vsel %vm2155, %v2152, %v2154
      %v2157 = vrot.slane %v2140, 7
      %v2158 = vsel %vm2148, %v2157, %v2136
      %v2159 = vsel %vm2150, %v2157, %v2158
      %v2160 = vrot.slane %v2144, 6
      %v2161 = vsel %vm2153, %v2160, %v2159
      %v2162 = vsel %vm2155, %v2160, %v2161
      %v2163 = vrot.slane %v2141, 7
      %v2164 = vsel %vm2148, %v2163, %v2137
      %v2165 = vsel %vm2150, %v2163, %v2164
      %v2166 = vrot.slane %v2145, 6
      %v2167 = vsel %vm2153, %v2166, %v2165
      %v2168 = vsel %vm2155, %v2166, %v2167
      %v2169 = vrot.slane %v2142, 7
      %v2170 = vsel %vm2148, %v2169, %v2138
      %v2171 = vsel %vm2150, %v2169, %v2170
      %v2172 = vrot.slane %v2146, 6
      %v2173 = vsel %vm2153, %v2172, %v2171
      %v2174 = vsel %vm2155, %v2172, %v2173
      %2179 = vst [vmem:[%s187] sm:$0x77] %v2156
      %2180 = vst [vmem:[%s187 + $0x8] sm:$0x77] %v2162
      %2181 = vst [vmem:[%s187 + $0x10] sm:$0x77] %v2168
      %2182 = vst [vmem:[%s187 + $0x18] sm:$0x77] %v2174
      %p2183 = scmp.lt.s32.totalorder %s14, 1
      %s2184 = scalar_select %p2183, %s14, 1
      %s2185 = smul.addr %s2184, 8
      %s2186 = smul.addr %s2185, 4
      %s2187 = scalar_lea.vmem %s3, %s2186
      // Predicated region
      $region33: #{forward.1} parent=31 // pred_check
        %p2188 = pneg %p105
      $region34: #{forward.1} parent=31 // pred_check_branch
        %2190 = sbr.rel (%p2188) target = $region36
      $region35: #{forward.1} parent=31 // pred_region
        _
      $region36: #{forward.1} parent=31 // pred_fallthru
        _
    $region32: #{forward.1} parent=5 // pred_fallthru
      _
    %p2191 = scmp.le.s32.totalorder 2, %s9
    // Predicated region
    $region37: #{forward.1} parent=5 // pred_check
      %p2192 = pneg %p2191
    $region38: #{forward.1} parent=5 // pred_check_branch
      %2194 = sbr.rel (%p2192) target = $region40
    $region39: #{forward.1} parent=5 // pred_region
      %s2195 = ssub.s32 %s9, 2
      // Predicated region
      $region41: #{forward.1} parent=39 // pred_check
        %p2196 = pneg %p111
      $region42: #{forward.1} parent=39 // pred_check_branch
        %2198 = sbr.rel (%p2196) target = $region44
      $region43: #{forward.1} parent=39 // pred_region
        %p2199 = scmp.lt.s32.totalorder %s15, 1
        %s2200 = scalar_select %p2199, %s15, 1
        %s2201 = smul.addr %s2200, 8
        %s2202 = smul.addr %s2201, 4
        %s2203 = scalar_lea.vmem %s3, %s2202
      $region44: #{forward.1} parent=39 // pred_fallthru
        _
    $region40: #{forward.1} parent=5 // pred_fallthru
      _
  $region6: #{forward.1} parent=0 // loop_footer
    %s13 = sadd.s32 1, %s9
  $region7: #{forward.1} parent=0 // loop_footer_branch
    %8 = sbr.rel target = $region3
  $region8: #{forward.1} parent=0 // loop_exit
    _

</llo_original>
